<compile_context>
chip_gen: v7x
topology: tpu7x:2x2x1
jax: 0.10.0
libtpu: 0.0.40
codegen_flags: <defaults>
</compile_context>

<pallas_src>
import functools
import math

import jax
import jax.numpy as jnp
from jax.experimental import pallas as pl
from jax.experimental.pallas import tpu as pltpu


# ----------------------------- Pallas kernel --------------------------------


def _layer_norm(x, gamma, beta, eps=1e-5):
    mean = jnp.mean(x, axis=-1, keepdims=True)
    xc = x - mean
    var = jnp.mean(xc * xc, axis=-1, keepdims=True)
    return xc * jax.lax.rsqrt(var + eps) * gamma + beta


def fused_forward_kernel(x0_ref, mask_ref, valid_ref,
                         wqkv_ref, wo_ref, w1_ref, w2_ref, sp_ref,
                         ew_ref, eb_ref,
                         o_ref,
                         x_sc,
                         *, n_head):
    """Grid = (batch_chunk, layer). Activations for the current chunk live in x_sc.

    x0_ref   : (Bc*S, D)   f32   initial embeddings+PE for this batch chunk
    mask_ref : (Bc, 1, S)  f32   additive key-padding mask (0 / -1e9)
    valid_ref: (Bc*S, 1)   f32   1.0 for valid tokens, 0.0 for padding (pooling mask)
    wqkv_ref : (D, 3D)     bf16  fused Q|K|V projection (1/sqrt(hd) folded into Q columns)
    wo_ref   : (D, D)      bf16  attention output projection
    w1_ref   : (D, dff)    bf16  FFN up-projection
    w2_ref   : (dff, D)    bf16  FFN down-projection
    sp_ref   : (P, D)      f32   packed per-layer small params (biases + LN gamma/beta)
    ew_ref   : (D, D)      bf16  e_proj weight (transposed); eb_ref: (1, D) f32 bias
    o_ref    : (Bc, D)     f32   final output (written on last layer only)
    """
    li = pl.program_id(1)
    n_layers = pl.num_programs(1)

    BS, D = x_sc.shape
    Bc = mask_ref.shape[0]
    S = mask_ref.shape[2]
    hd = D // n_head
    dff = w1_ref.shape[-1]
    ffr = dff // D

    @pl.when(li == 0)
    def _():
        x_sc[...] = x0_ref[...]            # (re)load the chunk's activations at layer 0

    # ---- unpack the single small-param DMA (static sublane slices) ----
    sp = sp_ref[...]                        # (P, D) f32
    bq  = sp[0:1, :]
    bk  = sp[1:2, :]
    bv  = sp[2:3, :]
    bo  = sp[3:4, :]
    b1  = jnp.concatenate([sp[4 + i:5 + i, :] for i in range(ffr)], axis=-1)   # (1, dff)
    b2  = sp[4 + ffr:5 + ffr, :]
    g1  = sp[5 + ffr:6 + ffr, :]
    be1 = sp[6 + ffr:7 + ffr, :]
    g2  = sp[7 + ffr:8 + ffr, :]
    be2 = sp[8 + ffr:9 + ffr, :]

    x = x_sc[...]                           # (Bc*S, D) f32
    x_bf = x.astype(jnp.bfloat16)

    # --- fused QKV projection: one big MXU matmul, bf16 operands / f32 accumulation ---
    qkv = jnp.dot(x_bf, wqkv_ref[...], preferred_element_type=jnp.float32)     # (BS, 3D)
    q = qkv[:, 0:D] + bq                    # 1/sqrt(hd) already folded into Wq / bq
    k = qkv[:, D:2 * D] + bk
    v = qkv[:, 2 * D:3 * D] + bv

    # mask broadcast hoisted ONCE per layer (jnp does not CSE broadcast_in_dim)
    mask_b = jnp.broadcast_to(mask_ref[...], (Bc, S, S))                        # f32

    # --- multi-head attention: per-head softmax in f32, context collected in registers ---
    ctx_parts = []
    for h in range(n_head):                 # small static unroll (n_head <= 8 here)
        sl = slice(h * hd, (h + 1) * hd)
        q_h = q[:, sl].reshape(Bc, S, hd).astype(jnp.bfloat16)
        k_h = k[:, sl].reshape(Bc, S, hd).astype(jnp.bfloat16)
        v_h = v[:, sl].reshape(Bc, S, hd).astype(jnp.bfloat16)

        s = jnp.einsum('bqd,bkd->bqk', q_h, k_h,
                       preferred_element_type=jnp.float32)                      # (Bc,S,S)
        s = s + mask_b
        s = s - jnp.max(s, axis=-1, keepdims=True)
        e = jnp.exp(s)
        p = e * pl.reciprocal(jnp.sum(e, axis=-1, keepdims=True), approx=True)  # EUP

        ctx_h = jnp.einsum('bqk,bkd->bqd', p.astype(jnp.bfloat16), v_h,
                           preferred_element_type=jnp.float32)                  # (Bc,S,hd)
        ctx_parts.append(ctx_h.astype(jnp.bfloat16).reshape(BS, hd))

    # single concatenate (no VMEM scratch, no masked partial stores)
    ctx = jnp.concatenate(ctx_parts, axis=-1)                                   # (BS, D)
    attn = jnp.dot(ctx, wo_ref[...], preferred_element_type=jnp.float32) + bo

    # residual + LayerNorm1 (f32)
    h1 = _layer_norm(x + attn, g1, be1)

    # feed-forward: Linear(D->dff) -> ReLU -> Linear(dff->D)
    ff = jnp.dot(h1.astype(jnp.bfloat16), w1_ref[...],
                 preferred_element_type=jnp.float32) + b1
    ff = jnp.maximum(ff, 0.0)
    ff = jnp.dot(ff.astype(jnp.bfloat16), w2_ref[...],
                 preferred_element_type=jnp.float32) + b2

    # residual + LayerNorm2 (f32); carry to next layer (stays in VMEM)
    h2 = _layer_norm(h1 + ff, g2, be2)
    x_sc[...] = h2

    # --- pooling + e_proj epilogue fused into the last layer step ---
    @pl.when(li == n_layers - 1)
    def _():
        # masked_fill(pad, 0).sum(seq): elementwise valid-mask multiply + per-batch reduce
        pooled = jnp.sum((h2 * valid_ref[...]).reshape(Bc, S, D), axis=1)       # (Bc, D)
        pooled = jnp.maximum(pooled, 0.0)
        o_ref[...] = jnp.dot(pooled.astype(jnp.bfloat16), ew_ref[...],
                             preferred_element_type=jnp.float32) + eb_ref[...]


# ----------------------------- Pallas wrapper --------------------------------


def revdict_fused(x0, mask_add, valid, layers, e_w_t, e_b, *,
                  n_head, n_layers, n_chunks=1, vmem_limit_bytes=32 * 1024 * 1024):
    BS, D = x0.shape
    B = mask_add.shape[0]
    S = mask_add.shape[2]
    assert D % n_head == 0
    assert B % n_chunks == 0
    Bc = B // n_chunks
    BSc = Bc * S
    dff = layers['w1_t'].shape[-1]
    P = layers['small'].shape[1]

    def chunk2(c, li):  # chunk-indexed 2-D arrays (x0, valid)
        return (c, 0)

    def chunk3(c, li):  # chunk-indexed 3-D arrays (mask, output)
        return (c, 0, 0)

    def inv2(c, li):    # layer- and chunk-invariant 2-D arrays (e_proj)
        return (0, 0)

    def layer3(c, li):  # per-layer stacked weights (leading layer axis squeezed)
        return (li, 0, 0)

    in_specs = [
        pl.BlockSpec((BSc, D), chunk2),            # x0
        pl.BlockSpec((Bc, 1, S), chunk3),          # additive key-padding mask
        pl.BlockSpec((BSc, 1), chunk2),            # valid pooling mask
        pl.BlockSpec((None, D, 3 * D), layer3),    # fused QKV weight (bf16)
        pl.BlockSpec((None, D, D), layer3),        # attention out-proj weight (bf16)
        pl.BlockSpec((None, D, dff), layer3),      # FFN up weight (bf16)
        pl.BlockSpec((None, dff, D), layer3),      # FFN down weight (bf16)
        pl.BlockSpec((None, P, D), layer3),        # packed small per-layer params (f32)
        pl.BlockSpec((D, D), inv2),                # e_proj weight^T (bf16)
        pl.BlockSpec((1, D), inv2),                # e_proj bias (f32)
    ]
    out_specs = pl.BlockSpec((None, Bc, D), chunk3)

    out = pl.pallas_call(
        functools.partial(fused_forward_kernel, n_head=n_head),
        out_shape=jax.ShapeDtypeStruct((n_chunks, Bc, D), jnp.float32),
        grid_spec=pltpu.PrefetchScalarGridSpec(
            num_scalar_prefetch=0,
            grid=(n_chunks, n_layers),
            in_specs=in_specs,
            out_specs=out_specs,
            scratch_shapes=[pltpu.VMEM((BSc, D), jnp.float32)],  # resident activation slab
        ),
        compiler_params=pltpu.CompilerParams(
            # batch chunks are independent -> parallel (2 TCs on v7x); layer loop carries
            # state in x_sc -> arbitrary (sequential).
            dimension_semantics=("parallel", "arbitrary"),
            # 32 MiB is safe on all generations at these shapes; raise on v5e/v6e (128 MiB
            # physical VMEM) for large D / BS configs.
            vmem_limit_bytes=vmem_limit_bytes,
        ),
    )(x0, mask_add, valid,
      layers['wqkv_t'], layers['wo_t'], layers['w1_t'], layers['w2_t'], layers['small'],
      e_w_t, e_b)
    return out.reshape(B, D)


# ----------------------------- Model glue ------------------------------------


def make_positional_encoding(max_len, d_model):
    position = jnp.arange(max_len, dtype=jnp.float32)[:, None]
    div_term = jnp.exp(jnp.arange(0, d_model, 2, dtype=jnp.float32)
                       * (-math.log(10000.0) / d_model))
    pe = jnp.zeros((max_len, d_model), jnp.float32)
    pe = pe.at[:, 0::2].set(jnp.sin(position * div_term))
    pe = pe.at[:, 1::2].set(jnp.cos(position * div_term))
    return pe  # (max_len, d_model)


def init_params(key, vocab_size, d_model, n_head, n_layers, dff, maxlen):
    assert d_model % n_head == 0 and dff % d_model == 0
    hd = d_model // n_head
    scale = 1.0 / math.sqrt(hd)
    ffr = dff // d_model
    P = 9 + ffr                                   # packed small-param rows per layer

    def xavier(k, shape):
        fan_out, fan_in = shape
        bound = math.sqrt(6.0 / (fan_in + fan_out))
        return jax.random.uniform(k, shape, jnp.float32, -bound, bound)

    keys = jax.random.split(key, 2 + n_layers)
    params = {
        'embedding': xavier(keys[0], (vocab_size, d_model)),
        'pe': make_positional_encoding(maxlen, d_model),
        'e_w_t': xavier(keys[1], (d_model, d_model)).T.astype(jnp.bfloat16),
        'e_b': jnp.zeros((1, d_model), jnp.float32),
    }

    wqkv_l, wo_l, w1_l, w2_l, sp_l = [], [], [], [], []
    for li in range(n_layers):
        lk = jax.random.split(keys[2 + li], 4)
        w_in = xavier(lk[0], (3 * d_model, d_model))            # PyTorch in_proj layout
        wq_t = w_in[:d_model].T * scale                         # fold 1/sqrt(hd) into Wq
        wk_t = w_in[d_model:2 * d_model].T
        wv_t = w_in[2 * d_model:].T
        wqkv_l.append(jnp.concatenate([wq_t, wk_t, wv_t], axis=1))   # (D, 3D)
        wo_l.append(xavier(lk[1], (d_model, d_model)).T)
        w1_l.append(xavier(lk[2], (dff, d_model)).T)
        w2_l.append(xavier(lk[3], (d_model, dff)).T)

        # rows: 0 bq | 1 bk | 2 bv | 3 bo | 4..4+ffr-1 b1 | 4+ffr b2
        #       5+ffr ln1_g | 6+ffr ln1_b | 7+ffr ln2_g | 8+ffr ln2_b
        sp = jnp.zeros((P, d_model), jnp.float32)               # biases zero (torch init)
        sp = sp.at[5 + ffr].set(1.0)                            # ln1 gamma
        sp = sp.at[7 + ffr].set(1.0)                            # ln2 gamma
        sp_l.append(sp)

    params['layers'] = dict(
        wqkv_t=jnp.stack(wqkv_l).astype(jnp.bfloat16),
        wo_t=jnp.stack(wo_l).astype(jnp.bfloat16),
        w1_t=jnp.stack(w1_l).astype(jnp.bfloat16),
        w2_t=jnp.stack(w2_l).astype(jnp.bfloat16),
        small=jnp.stack(sp_l),                                  # f32
    )
    return params


def revdict_forward(tokens, params, padding_idx, n_head, n_chunks=1):
    """tokens: (S, B) int32 (PyTorch seq-first convention). Returns (B, d_model) f32."""
    S, B = tokens.shape
    D = params['embedding'].shape[1]
    L = params['layers']['wqkv_t'].shape[0]

    embs = params['embedding'][tokens]                       # (S, B, D) gather (glue)
    src = embs + params['pe'][:S][:, None, :]                # positional encoding
    # dropout layers are identity in eval mode
    x0 = jnp.transpose(src, (1, 0, 2)).reshape(B * S, D).astype(jnp.float32)

    pad = (tokens == padding_idx).T                          # (B, S) bool
    # additive key-padding mask in f32 (NOTE: fully-padded rows give a uniform softmax here,
    # whereas PyTorch yields NaN for such rows).
    mask_add = jnp.where(pad, -1e9, 0.0).astype(jnp.float32)[:, None, :]   # (B, 1, S)
    # pooling mask: 1.0 for valid tokens, flattened in the same (batch-major) row order as x0
    valid = jnp.where(pad, 0.0, 1.0).astype(jnp.float32).reshape(B * S, 1)

    # choose a batch chunking that keeps row blocks sublane-aligned (Bc*S % 8) and divides B
    nc = max(1, n_chunks)
    while nc > 1 and (B % nc != 0 or ((B // nc) * S) % 8 != 0):
        nc -= 1

    return revdict_fused(x0, mask_add, valid, params['layers'],
                         params['e_w_t'], params['e_b'],
                         n_head=n_head, n_layers=L, n_chunks=nc)


# --------------------------------- main ---------------------------------------


if __name__ == "__main__":
    VOCAB = 50
    D_MODEL = 128          # lane-aligned hidden (multiple of 128); head_dim = 32
    N_HEAD = 4
    N_LAYERS = 2
    DFF = 2 * D_MODEL      # 256, lane-aligned
    MAXLEN = 64
    SEQ, BATCH = 8, 2
    PAD_IDX = 0
    N_CHUNKS = 2           # leading 'parallel' grid axis (both TensorCores on v7x)

    key = jax.random.PRNGKey(0)
    kp, kt = jax.random.split(key)
    params = init_params(kp, VOCAB, D_MODEL, N_HEAD, N_LAYERS, DFF, MAXLEN)

    tokens = jax.random.randint(kt, (SEQ, BATCH), 1, VOCAB, dtype=jnp.int32)
    tokens = tokens.at[6:, 0].set(PAD_IDX)    # add some padding to exercise the masks

    out = revdict_forward(tokens, params, PAD_IDX, N_HEAD, n_chunks=N_CHUNKS)
    jax.block_until_ready(out)
    assert out.shape == (BATCH, D_MODEL) and out.dtype == jnp.float32
    print("KERNEL_OK")
</pallas_src>

<mosaic_0001>
module attributes {stable_mosaic.version = 11 : i64} {
  func.func @fused_forward_kernel(%arg0: i32, %arg1: i32, %arg2: memref<8x128xf32, #tpu.memory_space<vmem>>, %arg3: memref<1x1x8xf32, #tpu.memory_space<vmem>>, %arg4: memref<8x1xf32, #tpu.memory_space<vmem>>, %arg5: memref<1x128x384xbf16, #tpu.memory_space<vmem>>, %arg6: memref<1x128x128xbf16, #tpu.memory_space<vmem>>, %arg7: memref<1x128x256xbf16, #tpu.memory_space<vmem>>, %arg8: memref<1x256x128xbf16, #tpu.memory_space<vmem>>, %arg9: memref<1x11x128xf32, #tpu.memory_space<vmem>>, %arg10: memref<128x128xbf16, #tpu.memory_space<vmem>>, %arg11: memref<1x128xf32, #tpu.memory_space<vmem>>, %arg12: memref<1x1x128xf32, #tpu.memory_space<vmem>>, %arg13: memref<8x128xf32, #tpu.memory_space<vmem>>) attributes {dimension_semantics = [#tpu.dimension_semantics<parallel>, #tpu.dimension_semantics<arbitrary>], iteration_bounds = array<i64: 2, 2>, scalar_prefetch = 0 : i64, scratch_operands = 1 : i64, tpu.core_type = #tpu.core_type<tc>, window_params = [{transform_indices = @transform_0, window_bounds = array<i64: 8, 128>}, {transform_indices = @transform_1, window_bounds = array<i64: 1, 1, 8>}, {transform_indices = @transform_2, window_bounds = array<i64: 8, 1>}, {transform_indices = @transform_3, window_bounds = array<i64: 1, 128, 384>}, {transform_indices = @transform_4, window_bounds = array<i64: 1, 128, 128>}, {transform_indices = @transform_5, window_bounds = array<i64: 1, 128, 256>}, {transform_indices = @transform_6, window_bounds = array<i64: 1, 256, 128>}, {transform_indices = @transform_7, window_bounds = array<i64: 1, 11, 128>}, {pipeline_mode = #tpu.pipeline_mode<synchronous>, transform_indices = @transform_8, window_bounds = array<i64: 128, 128>}, {pipeline_mode = #tpu.pipeline_mode<synchronous>, transform_indices = @transform_9, window_bounds = array<i64: 1, 128>}, {transform_indices = @transform_10, window_bounds = array<i64: 1, 1, 128>}]} {
    %c0_i32 = arith.constant 0 : i32
    %0 = arith.cmpi eq, %arg1, %c0_i32 : i32
    %1 = arith.extui %0 : i1 to i32
    %c0_i32_0 = arith.constant 0 : i32
    %2 = arith.cmpi ne, %1, %c0_i32_0 : i32
    scf.if %2 {
      %c0_53 = arith.constant 0 : index
      %c0_54 = arith.constant 0 : index
      %200 = vector.load %arg2[%c0_53, %c0_54] : memref<8x128xf32, #tpu.memory_space<vmem>>, vector<8x128xf32>
      %c0_55 = arith.constant 0 : index
      %c0_56 = arith.constant 0 : index
      %201 = vector.load %arg13[%c0_55, %c0_56] : memref<8x128xf32, #tpu.memory_space<vmem>>, vector<8x128xf32>
      tpu.vector_store %arg13[%c0_55, %c0_56], %200 {strides = array<i32>} : memref<8x128xf32, #tpu.memory_space<vmem>>, vector<8x128xf32>,
    } else {
    }
    %c0 = arith.constant 0 : index
    %c0_1 = arith.constant 0 : index
    %c0_2 = arith.constant 0 : index
    %3 = vector.load %arg9[%c0, %c0_1, %c0_2] : memref<1x11x128xf32, #tpu.memory_space<vmem>>, vector<1x11x128xf32>
    %4 = vector.shape_cast %3 : vector<1x11x128xf32> to vector<11x128xf32>
    %5 = vector.extract_strided_slice %4 {offsets = [0, 0], sizes = [1, 128], strides = [1, 1]} : vector<11x128xf32> to vector<1x128xf32>
    %6 = vector.extract_strided_slice %4 {offsets = [1, 0], sizes = [1, 128], strides = [1, 1]} : vector<11x128xf32> to vector<1x128xf32>
    %7 = vector.extract_strided_slice %4 {offsets = [2, 0], sizes = [1, 128], strides = [1, 1]} : vector<11x128xf32> to vector<1x128xf32>
    %8 = vector.extract_strided_slice %4 {offsets = [3, 0], sizes = [1, 128], strides = [1, 1]} : vector<11x128xf32> to vector<1x128xf32>
    %9 = vector.extract_strided_slice %4 {offsets = [4, 0], sizes = [1, 128], strides = [1, 1]} : vector<11x128xf32> to vector<1x128xf32>
    %10 = vector.extract_strided_slice %4 {offsets = [5, 0], sizes = [1, 128], strides = [1, 1]} : vector<11x128xf32> to vector<1x128xf32>
    %11 = tpu.concatenate %9, %10 in 1 : vector<1x128xf32>, vector<1x128xf32> -> vector<1x256xf32>
    %12 = vector.extract_strided_slice %4 {offsets = [6, 0], sizes = [1, 128], strides = [1, 1]} : vector<11x128xf32> to vector<1x128xf32>
    %13 = vector.extract_strided_slice %4 {offsets = [7, 0], sizes = [1, 128], strides = [1, 1]} : vector<11x128xf32> to vector<1x128xf32>
    %14 = vector.extract_strided_slice %4 {offsets = [8, 0], sizes = [1, 128], strides = [1, 1]} : vector<11x128xf32> to vector<1x128xf32>
    %15 = vector.extract_strided_slice %4 {offsets = [9, 0], sizes = [1, 128], strides = [1, 1]} : vector<11x128xf32> to vector<1x128xf32>
    %16 = vector.extract_strided_slice %4 {offsets = [10, 0], sizes = [1, 128], strides = [1, 1]} : vector<11x128xf32> to vector<1x128xf32>
    %c0_3 = arith.constant 0 : index
    %c0_4 = arith.constant 0 : index
    %17 = vector.load %arg13[%c0_3, %c0_4] : memref<8x128xf32, #tpu.memory_space<vmem>>, vector<8x128xf32>
    %18 = arith.truncf %17 : vector<8x128xf32> to vector<8x128xbf16>
    %c0_5 = arith.constant 0 : index
    %c0_6 = arith.constant 0 : index
    %c0_7 = arith.constant 0 : index
    %19 = vector.load %arg5[%c0_5, %c0_6, %c0_7] : memref<1x128x384xbf16, #tpu.memory_space<vmem>>, vector<1x128x384xbf16>
    %20 = vector.shape_cast %19 : vector<1x128x384xbf16> to vector<128x384xbf16>
    %cst = arith.constant dense<0.000000e+00> : vector<8x384xf32>
    %21 = tpu.matmul %18, %20, %cst {dimension_numbers = #tpu.dot_dimension_numbers<[1], [0], [0], [1], [0, 0, 1, 1], [], []>} : vector<8x128xbf16>, vector<128x384xbf16>, vector<8x384xf32> -> vector<8x384xf32>
    %22 = vector.extract_strided_slice %21 {offsets = [0, 0], sizes = [8, 128], strides = [1, 1]} : vector<8x384xf32> to vector<8x128xf32>
    %23 = vector.broadcast %5 : vector<1x128xf32> to vector<8x128xf32>
    %24 = arith.addf %22, %23 : vector<8x128xf32>
    %25 = vector.extract_strided_slice %21 {offsets = [0, 128], sizes = [8, 128], strides = [1, 1]} : vector<8x384xf32> to vector<8x128xf32>
    %26 = vector.broadcast %6 : vector<1x128xf32> to vector<8x128xf32>
    %27 = arith.addf %25, %26 : vector<8x128xf32>
    %28 = vector.extract_strided_slice %21 {offsets = [0, 256], sizes = [8, 128], strides = [1, 1]} : vector<8x384xf32> to vector<8x128xf32>
    %29 = vector.broadcast %7 : vector<1x128xf32> to vector<8x128xf32>
    %30 = arith.addf %28, %29 : vector<8x128xf32>
    %c0_8 = arith.constant 0 : index
    %c0_9 = arith.constant 0 : index
    %c0_10 = arith.constant 0 : index
    %31 = vector.load %arg3[%c0_8, %c0_9, %c0_10] : memref<1x1x8xf32, #tpu.memory_space<vmem>>, vector<1x1x8xf32>
    %32 = vector.shape_cast %31 : vector<1x1x8xf32> to vector<1x1x8xf32>
    %33 = vector.broadcast %32 : vector<1x1x8xf32> to vector<1x8x8xf32>
    %34 = vector.extract_strided_slice %24 {offsets = [0, 0], sizes = [8, 32], strides = [1, 1]} : vector<8x128xf32> to vector<8x32xf32>
    %35 = vector.shape_cast %34 : vector<8x32xf32> to vector<1x8x32xf32>
    %36 = arith.truncf %35 : vector<1x8x32xf32> to vector<1x8x32xbf16>
    %37 = vector.extract_strided_slice %27 {offsets = [0, 0], sizes = [8, 32], strides = [1, 1]} : vector<8x128xf32> to vector<8x32xf32>
    %38 = vector.shape_cast %37 : vector<8x32xf32> to vector<1x8x32xf32>
    %39 = arith.truncf %38 : vector<1x8x32xf32> to vector<1x8x32xbf16>
    %40 = vector.extract_strided_slice %30 {offsets = [0, 0], sizes = [8, 32], strides = [1, 1]} : vector<8x128xf32> to vector<8x32xf32>
    %41 = vector.shape_cast %40 : vector<8x32xf32> to vector<1x8x32xf32>
    %42 = arith.truncf %41 : vector<1x8x32xf32> to vector<1x8x32xbf16>
    "tpu.trace_start"() <{level = 10 : i32, message = "bqd,bkd->bqk"}> : () -> ()
    %cst_11 = arith.constant dense<0.000000e+00> : vector<1x8x8xf32>
    %43 = tpu.matmul %36, %39, %cst_11 {dimension_numbers = #tpu.dot_dimension_numbers<[2], [2], [1], [1], [0, 0, 0, 1, 1, 1], [0], [0]>} : vector<1x8x32xbf16>, vector<1x8x32xbf16>, vector<1x8x8xf32> -> vector<1x8x8xf32>
    "tpu.trace_stop"() : () -> ()
    %44 = arith.addf %43, %33 : vector<1x8x8xf32>
    %cst_12 = arith.constant dense<0xFF800000> : vector<1x8xf32>
    %45 = vector.multi_reduction <maximumf>, %44, %cst_12 [2] : vector<1x8x8xf32> to vector<1x8xf32>
    %46 = vector.shape_cast %45 : vector<1x8xf32> to vector<1x8x1xf32>
    %47 = vector.broadcast %46 : vector<1x8x1xf32> to vector<1x8x8xf32>
    %48 = arith.subf %44, %47 : vector<1x8x8xf32>
    %49 = math.exp %48 : vector<1x8x8xf32>
    %cst_13 = arith.constant dense<0.000000e+00> : vector<1x8xf32>
    %50 = vector.multi_reduction <add>, %49, %cst_13 [2] : vector<1x8x8xf32> to vector<1x8xf32>
    %51 = vector.shape_cast %50 : vector<1x8xf32> to vector<1x8x1xf32>
    %52 = tpu.reciprocal %51 {approx = true} : vector<1x8x1xf32> -> vector<1x8x1xf32>
    %53 = vector.broadcast %52 : vector<1x8x1xf32> to vector<1x8x8xf32>
    %54 = arith.mulf %49, %53 : vector<1x8x8xf32>
    %55 = arith.truncf %54 : vector<1x8x8xf32> to vector<1x8x8xbf16>
    "tpu.trace_start"() <{level = 10 : i32, message = "bqk,bkd->bqd"}> : () -> ()
    %cst_14 = arith.constant dense<0.000000e+00> : vector<1x8x32xf32>
    %56 = tpu.matmul %55, %42, %cst_14 {dimension_numbers = #tpu.dot_dimension_numbers<[2], [1], [1], [2], [0, 0, 0, 1, 1, 2], [0], [0]>} : vector<1x8x8xbf16>, vector<1x8x32xbf16>, vector<1x8x32xf32> -> vector<1x8x32xf32>
    "tpu.trace_stop"() : () -> ()
    %57 = arith.truncf %56 : vector<1x8x32xf32> to vector<1x8x32xbf16>
    %58 = vector.shape_cast %57 : vector<1x8x32xbf16> to vector<8x32xbf16>
    %59 = vector.extract_strided_slice %24 {offsets = [0, 32], sizes = [8, 32], strides = [1, 1]} : vector<8x128xf32> to vector<8x32xf32>
    %60 = vector.shape_cast %59 : vector<8x32xf32> to vector<1x8x32xf32>
    %61 = arith.truncf %60 : vector<1x8x32xf32> to vector<1x8x32xbf16>
    %62 = vector.extract_strided_slice %27 {offsets = [0, 32], sizes = [8, 32], strides = [1, 1]} : vector<8x128xf32> to vector<8x32xf32>
    %63 = vector.shape_cast %62 : vector<8x32xf32> to vector<1x8x32xf32>
    %64 = arith.truncf %63 : vector<1x8x32xf32> to vector<1x8x32xbf16>
    %65 = vector.extract_strided_slice %30 {offsets = [0, 32], sizes = [8, 32], strides = [1, 1]} : vector<8x128xf32> to vector<8x32xf32>
    %66 = vector.shape_cast %65 : vector<8x32xf32> to vector<1x8x32xf32>
    %67 = arith.truncf %66 : vector<1x8x32xf32> to vector<1x8x32xbf16>
    "tpu.trace_start"() <{level = 10 : i32, message = "bqd,bkd->bqk"}> : () -> ()
    %cst_15 = arith.constant dense<0.000000e+00> : vector<1x8x8xf32>
    %68 = tpu.matmul %61, %64, %cst_15 {dimension_numbers = #tpu.dot_dimension_numbers<[2], [2], [1], [1], [0, 0, 0, 1, 1, 1], [0], [0]>} : vector<1x8x32xbf16>, vector<1x8x32xbf16>, vector<1x8x8xf32> -> vector<1x8x8xf32>
    "tpu.trace_stop"() : () -> ()
    %69 = arith.addf %68, %33 : vector<1x8x8xf32>
    %cst_16 = arith.constant dense<0xFF800000> : vector<1x8xf32>
    %70 = vector.multi_reduction <maximumf>, %69, %cst_16 [2] : vector<1x8x8xf32> to vector<1x8xf32>
    %71 = vector.shape_cast %70 : vector<1x8xf32> to vector<1x8x1xf32>
    %72 = vector.broadcast %71 : vector<1x8x1xf32> to vector<1x8x8xf32>
    %73 = arith.subf %69, %72 : vector<1x8x8xf32>
    %74 = math.exp %73 : vector<1x8x8xf32>
    %cst_17 = arith.constant dense<0.000000e+00> : vector<1x8xf32>
    %75 = vector.multi_reduction <add>, %74, %cst_17 [2] : vector<1x8x8xf32> to vector<1x8xf32>
    %76 = vector.shape_cast %75 : vector<1x8xf32> to vector<1x8x1xf32>
    %77 = tpu.reciprocal %76 {approx = true} : vector<1x8x1xf32> -> vector<1x8x1xf32>
    %78 = vector.broadcast %77 : vector<1x8x1xf32> to vector<1x8x8xf32>
    %79 = arith.mulf %74, %78 : vector<1x8x8xf32>
    %80 = arith.truncf %79 : vector<1x8x8xf32> to vector<1x8x8xbf16>
    "tpu.trace_start"() <{level = 10 : i32, message = "bqk,bkd->bqd"}> : () -> ()
    %cst_18 = arith.constant dense<0.000000e+00> : vector<1x8x32xf32>
    %81 = tpu.matmul %80, %67, %cst_18 {dimension_numbers = #tpu.dot_dimension_numbers<[2], [1], [1], [2], [0, 0, 0, 1, 1, 2], [0], [0]>} : vector<1x8x8xbf16>, vector<1x8x32xbf16>, vector<1x8x32xf32> -> vector<1x8x32xf32>
    "tpu.trace_stop"() : () -> ()
    %82 = arith.truncf %81 : vector<1x8x32xf32> to vector<1x8x32xbf16>
    %83 = vector.shape_cast %82 : vector<1x8x32xbf16> to vector<8x32xbf16>
    %84 = vector.extract_strided_slice %24 {offsets = [0, 64], sizes = [8, 32], strides = [1, 1]} : vector<8x128xf32> to vector<8x32xf32>
    %85 = vector.shape_cast %84 : vector<8x32xf32> to vector<1x8x32xf32>
    %86 = arith.truncf %85 : vector<1x8x32xf32> to vector<1x8x32xbf16>
    %87 = vector.extract_strided_slice %27 {offsets = [0, 64], sizes = [8, 32], strides = [1, 1]} : vector<8x128xf32> to vector<8x32xf32>
    %88 = vector.shape_cast %87 : vector<8x32xf32> to vector<1x8x32xf32>
    %89 = arith.truncf %88 : vector<1x8x32xf32> to vector<1x8x32xbf16>
    %90 = vector.extract_strided_slice %30 {offsets = [0, 64], sizes = [8, 32], strides = [1, 1]} : vector<8x128xf32> to vector<8x32xf32>
    %91 = vector.shape_cast %90 : vector<8x32xf32> to vector<1x8x32xf32>
    %92 = arith.truncf %91 : vector<1x8x32xf32> to vector<1x8x32xbf16>
    "tpu.trace_start"() <{level = 10 : i32, message = "bqd,bkd->bqk"}> : () -> ()
    %cst_19 = arith.constant dense<0.000000e+00> : vector<1x8x8xf32>
    %93 = tpu.matmul %86, %89, %cst_19 {dimension_numbers = #tpu.dot_dimension_numbers<[2], [2], [1], [1], [0, 0, 0, 1, 1, 1], [0], [0]>} : vector<1x8x32xbf16>, vector<1x8x32xbf16>, vector<1x8x8xf32> -> vector<1x8x8xf32>
    "tpu.trace_stop"() : () -> ()
    %94 = arith.addf %93, %33 : vector<1x8x8xf32>
    %cst_20 = arith.constant dense<0xFF800000> : vector<1x8xf32>
    %95 = vector.multi_reduction <maximumf>, %94, %cst_20 [2] : vector<1x8x8xf32> to vector<1x8xf32>
    %96 = vector.shape_cast %95 : vector<1x8xf32> to vector<1x8x1xf32>
    %97 = vector.broadcast %96 : vector<1x8x1xf32> to vector<1x8x8xf32>
    %98 = arith.subf %94, %97 : vector<1x8x8xf32>
    %99 = math.exp %98 : vector<1x8x8xf32>
    %cst_21 = arith.constant dense<0.000000e+00> : vector<1x8xf32>
    %100 = vector.multi_reduction <add>, %99, %cst_21 [2] : vector<1x8x8xf32> to vector<1x8xf32>
    %101 = vector.shape_cast %100 : vector<1x8xf32> to vector<1x8x1xf32>
    %102 = tpu.reciprocal %101 {approx = true} : vector<1x8x1xf32> -> vector<1x8x1xf32>
    %103 = vector.broadcast %102 : vector<1x8x1xf32> to vector<1x8x8xf32>
    %104 = arith.mulf %99, %103 : vector<1x8x8xf32>
    %105 = arith.truncf %104 : vector<1x8x8xf32> to vector<1x8x8xbf16>
    "tpu.trace_start"() <{level = 10 : i32, message = "bqk,bkd->bqd"}> : () -> ()
    %cst_22 = arith.constant dense<0.000000e+00> : vector<1x8x32xf32>
    %106 = tpu.matmul %105, %92, %cst_22 {dimension_numbers = #tpu.dot_dimension_numbers<[2], [1], [1], [2], [0, 0, 0, 1, 1, 2], [0], [0]>} : vector<1x8x8xbf16>, vector<1x8x32xbf16>, vector<1x8x32xf32> -> vector<1x8x32xf32>
    "tpu.trace_stop"() : () -> ()
    %107 = arith.truncf %106 : vector<1x8x32xf32> to vector<1x8x32xbf16>
    %108 = vector.shape_cast %107 : vector<1x8x32xbf16> to vector<8x32xbf16>
    %109 = vector.extract_strided_slice %24 {offsets = [0, 96], sizes = [8, 32], strides = [1, 1]} : vector<8x128xf32> to vector<8x32xf32>
    %110 = vector.shape_cast %109 : vector<8x32xf32> to vector<1x8x32xf32>
    %111 = arith.truncf %110 : vector<1x8x32xf32> to vector<1x8x32xbf16>
    %112 = vector.extract_strided_slice %27 {offsets = [0, 96], sizes = [8, 32], strides = [1, 1]} : vector<8x128xf32> to vector<8x32xf32>
    %113 = vector.shape_cast %112 : vector<8x32xf32> to vector<1x8x32xf32>
    %114 = arith.truncf %113 : vector<1x8x32xf32> to vector<1x8x32xbf16>
    %115 = vector.extract_strided_slice %30 {offsets = [0, 96], sizes = [8, 32], strides = [1, 1]} : vector<8x128xf32> to vector<8x32xf32>
    %116 = vector.shape_cast %115 : vector<8x32xf32> to vector<1x8x32xf32>
    %117 = arith.truncf %116 : vector<1x8x32xf32> to vector<1x8x32xbf16>
    "tpu.trace_start"() <{level = 10 : i32, message = "bqd,bkd->bqk"}> : () -> ()
    %cst_23 = arith.constant dense<0.000000e+00> : vector<1x8x8xf32>
    %118 = tpu.matmul %111, %114, %cst_23 {dimension_numbers = #tpu.dot_dimension_numbers<[2], [2], [1], [1], [0, 0, 0, 1, 1, 1], [0], [0]>} : vector<1x8x32xbf16>, vector<1x8x32xbf16>, vector<1x8x8xf32> -> vector<1x8x8xf32>
    "tpu.trace_stop"() : () -> ()
    %119 = arith.addf %118, %33 : vector<1x8x8xf32>
    %cst_24 = arith.constant dense<0xFF800000> : vector<1x8xf32>
    %120 = vector.multi_reduction <maximumf>, %119, %cst_24 [2] : vector<1x8x8xf32> to vector<1x8xf32>
    %121 = vector.shape_cast %120 : vector<1x8xf32> to vector<1x8x1xf32>
    %122 = vector.broadcast %121 : vector<1x8x1xf32> to vector<1x8x8xf32>
    %123 = arith.subf %119, %122 : vector<1x8x8xf32>
    %124 = math.exp %123 : vector<1x8x8xf32>
    %cst_25 = arith.constant dense<0.000000e+00> : vector<1x8xf32>
    %125 = vector.multi_reduction <add>, %124, %cst_25 [2] : vector<1x8x8xf32> to vector<1x8xf32>
    %126 = vector.shape_cast %125 : vector<1x8xf32> to vector<1x8x1xf32>
    %127 = tpu.reciprocal %126 {approx = true} : vector<1x8x1xf32> -> vector<1x8x1xf32>
    %128 = vector.broadcast %127 : vector<1x8x1xf32> to vector<1x8x8xf32>
    %129 = arith.mulf %124, %128 : vector<1x8x8xf32>
    %130 = arith.truncf %129 : vector<1x8x8xf32> to vector<1x8x8xbf16>
    "tpu.trace_start"() <{level = 10 : i32, message = "bqk,bkd->bqd"}> : () -> ()
    %cst_26 = arith.constant dense<0.000000e+00> : vector<1x8x32xf32>
    %131 = tpu.matmul %130, %117, %cst_26 {dimension_numbers = #tpu.dot_dimension_numbers<[2], [1], [1], [2], [0, 0, 0, 1, 1, 2], [0], [0]>} : vector<1x8x8xbf16>, vector<1x8x32xbf16>, vector<1x8x32xf32> -> vector<1x8x32xf32>
    "tpu.trace_stop"() : () -> ()
    %132 = arith.truncf %131 : vector<1x8x32xf32> to vector<1x8x32xbf16>
    %133 = vector.shape_cast %132 : vector<1x8x32xbf16> to vector<8x32xbf16>
    %134 = tpu.concatenate %58, %83, %108, %133 in 1 : vector<8x32xbf16>, vector<8x32xbf16>, vector<8x32xbf16>, vector<8x32xbf16> -> vector<8x128xbf16>
    %c0_27 = arith.constant 0 : index
    %c0_28 = arith.constant 0 : index
    %c0_29 = arith.constant 0 : index
    %135 = vector.load %arg6[%c0_27, %c0_28, %c0_29] : memref<1x128x128xbf16, #tpu.memory_space<vmem>>, vector<1x128x128xbf16>
    %136 = vector.shape_cast %135 : vector<1x128x128xbf16> to vector<128x128xbf16>
    %cst_30 = arith.constant dense<0.000000e+00> : vector<8x128xf32>
    %137 = tpu.matmul %134, %136, %cst_30 {dimension_numbers = #tpu.dot_dimension_numbers<[1], [0], [0], [1], [0, 0, 1, 1], [], []>} : vector<8x128xbf16>, vector<128x128xbf16>, vector<8x128xf32> -> vector<8x128xf32>
    %138 = vector.broadcast %8 : vector<1x128xf32> to vector<8x128xf32>
    %139 = arith.addf %137, %138 : vector<8x128xf32>
    %140 = arith.addf %17, %139 : vector<8x128xf32>
    %cst_31 = arith.constant dense<0.000000e+00> : vector<8xf32>
    %141 = vector.multi_reduction <add>, %140, %cst_31 [1] : vector<8x128xf32> to vector<8xf32>
    %142 = vector.shape_cast %141 : vector<8xf32> to vector<8x1xf32>
    %cst_32 = arith.constant 1.280000e+02 : f32
    %143 = vector.broadcast %cst_32 : f32 to vector<8x1xf32>
    %144 = arith.divf %142, %143 : vector<8x1xf32>
    %145 = vector.broadcast %144 : vector<8x1xf32> to vector<8x128xf32>
    %146 = arith.subf %140, %145 : vector<8x128xf32>
    %147 = arith.mulf %146, %146 : vector<8x128xf32>
    %cst_33 = arith.constant dense<0.000000e+00> : vector<8xf32>
    %148 = vector.multi_reduction <add>, %147, %cst_33 [1] : vector<8x128xf32> to vector<8xf32>
    %149 = vector.shape_cast %148 : vector<8xf32> to vector<8x1xf32>
    %cst_34 = arith.constant 1.280000e+02 : f32
    %150 = vector.broadcast %cst_34 : f32 to vector<8x1xf32>
    %151 = arith.divf %149, %150 : vector<8x1xf32>
    %cst_35 = arith.constant 9.99999974E-6 : f32
    %152 = vector.broadcast %cst_35 : f32 to vector<8x1xf32>
    %153 = arith.addf %151, %152 : vector<8x1xf32>
    %154 = math.rsqrt %153 : vector<8x1xf32>
    %155 = vector.broadcast %154 : vector<8x1xf32> to vector<8x128xf32>
    %156 = arith.mulf %146, %155 : vector<8x128xf32>
    %157 = vector.broadcast %13 : vector<1x128xf32> to vector<8x128xf32>
    %158 = arith.mulf %156, %157 : vector<8x128xf32>
    %159 = vector.broadcast %14 : vector<1x128xf32> to vector<8x128xf32>
    %160 = arith.addf %158, %159 : vector<8x128xf32>
    %161 = arith.truncf %160 : vector<8x128xf32> to vector<8x128xbf16>
    %c0_36 = arith.constant 0 : index
    %c0_37 = arith.constant 0 : index
    %c0_38 = arith.constant 0 : index
    %162 = vector.load %arg7[%c0_36, %c0_37, %c0_38] : memref<1x128x256xbf16, #tpu.memory_space<vmem>>, vector<1x128x256xbf16>
    %163 = vector.shape_cast %162 : vector<1x128x256xbf16> to vector<128x256xbf16>
    %cst_39 = arith.constant dense<0.000000e+00> : vector<8x256xf32>
    %164 = tpu.matmul %161, %163, %cst_39 {dimension_numbers = #tpu.dot_dimension_numbers<[1], [0], [0], [1], [0, 0, 1, 1], [], []>} : vector<8x128xbf16>, vector<128x256xbf16>, vector<8x256xf32> -> vector<8x256xf32>
    %165 = vector.broadcast %11 : vector<1x256xf32> to vector<8x256xf32>
    %166 = arith.addf %164, %165 : vector<8x256xf32>
    %cst_40 = arith.constant 0.000000e+00 : f32
    %167 = vector.broadcast %cst_40 : f32 to vector<8x256xf32>
    %168 = arith.maximumf %166, %167 : vector<8x256xf32>
    %169 = arith.truncf %168 : vector<8x256xf32> to vector<8x256xbf16>
    %c0_41 = arith.constant 0 : index
    %c0_42 = arith.constant 0 : index
    %c0_43 = arith.constant 0 : index
    %170 = vector.load %arg8[%c0_41, %c0_42, %c0_43] : memref<1x256x128xbf16, #tpu.memory_space<vmem>>, vector<1x256x128xbf16>
    %171 = vector.shape_cast %170 : vector<1x256x128xbf16> to vector<256x128xbf16>
    %cst_44 = arith.constant dense<0.000000e+00> : vector<8x128xf32>
    %172 = tpu.matmul %169, %171, %cst_44 {dimension_numbers = #tpu.dot_dimension_numbers<[1], [0], [0], [1], [0, 0, 1, 1], [], []>} : vector<8x256xbf16>, vector<256x128xbf16>, vector<8x128xf32> -> vector<8x128xf32>
    %173 = vector.broadcast %12 : vector<1x128xf32> to vector<8x128xf32>
    %174 = arith.addf %172, %173 : vector<8x128xf32>
    %175 = arith.addf %160, %174 : vector<8x128xf32>
    %cst_45 = arith.constant dense<0.000000e+00> : vector<8xf32>
    %176 = vector.multi_reduction <add>, %175, %cst_45 [1] : vector<8x128xf32> to vector<8xf32>
    %177 = vector.shape_cast %176 : vector<8xf32> to vector<8x1xf32>
    %cst_46 = arith.constant 1.280000e+02 : f32
    %178 = vector.broadcast %cst_46 : f32 to vector<8x1xf32>
    %179 = arith.divf %177, %178 : vector<8x1xf32>
    %180 = vector.broadcast %179 : vector<8x1xf32> to vector<8x128xf32>
    %181 = arith.subf %175, %180 : vector<8x128xf32>
    %182 = arith.mulf %181, %181 : vector<8x128xf32>
    %cst_47 = arith.constant dense<0.000000e+00> : vector<8xf32>
    %183 = vector.multi_reduction <add>, %182, %cst_47 [1] : vector<8x128xf32> to vector<8xf32>
    %184 = vector.shape_cast %183 : vector<8xf32> to vector<8x1xf32>
    %cst_48 = arith.constant 1.280000e+02 : f32
    %185 = vector.broadcast %cst_48 : f32 to vector<8x1xf32>
    %186 = arith.divf %184, %185 : vector<8x1xf32>
    %cst_49 = arith.constant 9.99999974E-6 : f32
    %187 = vector.broadcast %cst_49 : f32 to vector<8x1xf32>
    %188 = arith.addf %186, %187 : vector<8x1xf32>
    %189 = math.rsqrt %188 : vector<8x1xf32>
    %190 = vector.broadcast %189 : vector<8x1xf32> to vector<8x128xf32>
    %191 = arith.mulf %181, %190 : vector<8x128xf32>
    %192 = vector.broadcast %15 : vector<1x128xf32> to vector<8x128xf32>
    %193 = arith.mulf %191, %192 : vector<8x128xf32>
    %194 = vector.broadcast %16 : vector<1x128xf32> to vector<8x128xf32>
    %195 = arith.addf %193, %194 : vector<8x128xf32>
    %c0_50 = arith.constant 0 : index
    %c0_51 = arith.constant 0 : index
    %196 = vector.load %arg13[%c0_50, %c0_51] : memref<8x128xf32, #tpu.memory_space<vmem>>, vector<8x128xf32>
    tpu.vector_store %arg13[%c0_50, %c0_51], %195 {strides = array<i32>} : memref<8x128xf32, #tpu.memory_space<vmem>>, vector<8x128xf32>,
    %c1_i32 = arith.constant 1 : i32
    %197 = arith.cmpi eq, %arg1, %c1_i32 : i32
    %198 = arith.extui %197 : i1 to i32
    %c0_i32_52 = arith.constant 0 : i32
    %199 = arith.cmpi ne, %198, %c0_i32_52 : i32
    scf.if %199 {
      %c0_53 = arith.constant 0 : index
      %c0_54 = arith.constant 0 : index
      %200 = vector.load %arg4[%c0_53, %c0_54] : memref<8x1xf32, #tpu.memory_space<vmem>>, vector<8x1xf32>
      %201 = vector.broadcast %200 : vector<8x1xf32> to vector<8x128xf32>
      %202 = arith.mulf %195, %201 : vector<8x128xf32>
      %203 = vector.shape_cast %202 : vector<8x128xf32> to vector<1x8x128xf32>
      %cst_55 = arith.constant dense<0.000000e+00> : vector<1x128xf32>
      %204 = vector.multi_reduction <add>, %203, %cst_55 [1] : vector<1x8x128xf32> to vector<1x128xf32>
      %cst_56 = arith.constant 0.000000e+00 : f32
      %205 = vector.broadcast %cst_56 : f32 to vector<1x128xf32>
      %206 = arith.maximumf %204, %205 : vector<1x128xf32>
      %207 = arith.truncf %206 : vector<1x128xf32> to vector<1x128xbf16>
      %c0_57 = arith.constant 0 : index
      %c0_58 = arith.constant 0 : index
      %208 = vector.load %arg10[%c0_57, %c0_58] : memref<128x128xbf16, #tpu.memory_space<vmem>>, vector<128x128xbf16>
      %cst_59 = arith.constant dense<0.000000e+00> : vector<1x128xf32>
      %209 = tpu.matmul %207, %208, %cst_59 {dimension_numbers = #tpu.dot_dimension_numbers<[1], [0], [0], [1], [0, 0, 1, 1], [], []>} : vector<1x128xbf16>, vector<128x128xbf16>, vector<1x128xf32> -> vector<1x128xf32>
      %c0_60 = arith.constant 0 : index
      %c0_61 = arith.constant 0 : index
      %210 = vector.load %arg11[%c0_60, %c0_61] : memref<1x128xf32, #tpu.memory_space<vmem>>, vector<1x128xf32>
      %211 = arith.addf %209, %210 : vector<1x128xf32>
      %c0_62 = arith.constant 0 : index
      %c0_63 = arith.constant 0 : index
      %c0_64 = arith.constant 0 : index
      %212 = vector.load %arg12[%c0_62, %c0_63, %c0_64] : memref<1x1x128xf32, #tpu.memory_space<vmem>>, vector<1x1x128xf32>
      %213 = vector.shape_cast %212 : vector<1x1x128xf32> to vector<1x128xf32>
      %214 = vector.shape_cast %211 : vector<1x128xf32> to vector<1x1x128xf32>
      tpu.vector_store %arg12[%c0_62, %c0_63, %c0_64], %214 {strides = array<i32>} : memref<1x1x128xf32, #tpu.memory_space<vmem>>, vector<1x1x128xf32>,
    } else {
    }
    return
  }
  func.func @transform_0(%arg0: i32, %arg1: i32) -> (i32, i32) {
    %c0_i32 = arith.constant 0 : i32
    %c0_i32_0 = arith.constant 0 : i32
    return %arg0, %c0_i32 : i32, i32
  }
  func.func @transform_1(%arg0: i32, %arg1: i32) -> (i32, i32, i32) {
    %c0_i32 = arith.constant 0 : i32
    %c0_i32_0 = arith.constant 0 : i32
    %c0_i32_1 = arith.constant 0 : i32
    return %arg0, %c0_i32, %c0_i32_0 : i32, i32, i32
  }
  func.func @transform_2(%arg0: i32, %arg1: i32) -> (i32, i32) {
    %c0_i32 = arith.constant 0 : i32
    %c0_i32_0 = arith.constant 0 : i32
    return %arg0, %c0_i32 : i32, i32
  }
  func.func @transform_3(%arg0: i32, %arg1: i32) -> (i32, i32, i32) {
    %c0_i32 = arith.constant 0 : i32
    %c0_i32_0 = arith.constant 0 : i32
    %c0_i32_1 = arith.constant 0 : i32
    return %arg1, %c0_i32, %c0_i32_0 : i32, i32, i32
  }
  func.func @transform_4(%arg0: i32, %arg1: i32) -> (i32, i32, i32) {
    %c0_i32 = arith.constant 0 : i32
    %c0_i32_0 = arith.constant 0 : i32
    %c0_i32_1 = arith.constant 0 : i32
    return %arg1, %c0_i32, %c0_i32_0 : i32, i32, i32
  }
  func.func @transform_5(%arg0: i32, %arg1: i32) -> (i32, i32, i32) {
    %c0_i32 = arith.constant 0 : i32
    %c0_i32_0 = arith.constant 0 : i32
    %c0_i32_1 = arith.constant 0 : i32
    return %arg1, %c0_i32, %c0_i32_0 : i32, i32, i32
  }
  func.func @transform_6(%arg0: i32, %arg1: i32) -> (i32, i32, i32) {
    %c0_i32 = arith.constant 0 : i32
    %c0_i32_0 = arith.constant 0 : i32
    %c0_i32_1 = arith.constant 0 : i32
    return %arg1, %c0_i32, %c0_i32_0 : i32, i32, i32
  }
  func.func @transform_7(%arg0: i32, %arg1: i32) -> (i32, i32, i32) {
    %c0_i32 = arith.constant 0 : i32
    %c0_i32_0 = arith.constant 0 : i32
    %c0_i32_1 = arith.constant 0 : i32
    return %arg1, %c0_i32, %c0_i32_0 : i32, i32, i32
  }
  func.func @transform_8(%arg0: i32, %arg1: i32) -> (i32, i32) {
    %c0_i32 = arith.constant 0 : i32
    %c0_i32_0 = arith.constant 0 : i32
    %c0_i32_1 = arith.constant 0 : i32
    return %c0_i32, %c0_i32_0 : i32, i32
  }
  func.func @transform_9(%arg0: i32, %arg1: i32) -> (i32, i32) {
    %c0_i32 = arith.constant 0 : i32
    %c0_i32_0 = arith.constant 0 : i32
    %c0_i32_1 = arith.constant 0 : i32
    return %c0_i32, %c0_i32_0 : i32, i32
  }
  func.func @transform_10(%arg0: i32, %arg1: i32) -> (i32, i32, i32) {
    %c0_i32 = arith.constant 0 : i32
    %c0_i32_0 = arith.constant 0 : i32
    %c0_i32_1 = arith.constant 0 : i32
    return %arg0, %c0_i32, %c0_i32_0 : i32, i32, i32
  }
}

</mosaic_0001>

<llo_original>
// kernel: tpu_custom_call.1
$region0: #{tpu_custom_call.1}
  #allocation0 [shape = 'u32[]', space=smem, size = 0x4, offset = 0x4, fixed_abs, tag = 'smem constant byte address 0x4 - core index']
  #allocation1 [shape = 'u32[144,128]{1,0:T(1,128)}', space=vmem, size = 0x12000, scoped, tag = 'internal scratch']
  #allocation2 [shape = 'f32[8,128]{1,0:T(8,128)}', space=vmem, size = 0x1000, scoped, tag = 'scratch operand']
  %s0 = inlined_call_operand.vmem [shape: f32[16,128], index: 0, kind: input, shape index: {}]
  %s1 = inlined_call_operand.vmem [shape: f32[2,1,8], index: 1, kind: input, shape index: {}]
  %s2 = inlined_call_operand.vmem [shape: f32[16,1], index: 2, kind: input, shape index: {}]
  %s3 = inlined_call_operand.hbm [shape: bf16[2,128,384], index: 3, kind: input, shape index: {}]
  %s4 = inlined_call_operand.hbm [shape: bf16[2,128,128], index: 4, kind: input, shape index: {}]
  %s5 = inlined_call_operand.hbm [shape: bf16[2,128,256], index: 5, kind: input, shape index: {}]
  %s6 = inlined_call_operand.hbm [shape: bf16[2,256,128], index: 6, kind: input, shape index: {}]
  %s7 = inlined_call_operand.vmem [shape: f32[2,11,128], index: 7, kind: input, shape index: {}]
  %s8 = inlined_call_operand.vmem [shape: bf16[128,128], index: 8, kind: input, shape index: {}]
  %s9 = inlined_call_operand.vmem [shape: f32[1,128], index: 9, kind: input, shape index: {}]
  %s10 = inlined_call_operand.hbm [shape: f32[2,1,128], index: 10, kind: output, shape index: {}]
  %s11 = sld [smem:[#allocation0]]
  $region97: #{tpu_custom_call.1} parent=0
    _
  %s13 = ssub.s32 1, %s11
  %s14 = scalar_select 0, %s13, %s11
  $region1: #{tpu_custom_call.1} parent=0
    #allocation3 [shape = 'u8[196608]{0}', space=vmem, size = 0x30000, scoped, tag = 'input window, operand 3']
    #allocation4 [shape = 's32[2]{0}', space=sflag, size = 0x8, scoped, tag = 'scoped memory for tpu_custom_call.1']
    #allocation5 [shape = 's32[2]{0}', space=sflag, size = 0x8, scoped, tag = 'scoped memory for tpu_custom_call.1']
    #allocation6 [shape = 'u8[65536]{0}', space=vmem, size = 0x10000, scoped, tag = 'input window, operand 4']
    #allocation7 [shape = 's32[2]{0}', space=sflag, size = 0x8, scoped, tag = 'scoped memory for tpu_custom_call.1']
    #allocation8 [shape = 'u8[131072]{0}', space=vmem, size = 0x20000, scoped, tag = 'input window, operand 5']
    #allocation9 [shape = 'u8[131072]{0}', space=vmem, size = 0x20000, scoped, tag = 'input window, operand 6']
    #allocation10 [shape = 's32[2]{0}', space=sflag, size = 0x8, scoped, tag = 'scoped memory for tpu_custom_call.1']
    #allocation11 [shape = 'u8[1024]{0}', space=vmem, size = 0x400, scoped, tag = 'output window, operand 0']
    %15 = vsyncpa [#allocation4], 0
    %s16 = scalar_lea.sflag [#allocation4], 1
    %17 = vsyncpa %s16, 0
    %18 = vsyncpa [#allocation7], 0
    %s19 = scalar_lea.sflag [#allocation7], 1
    %20 = vsyncpa %s19, 0
    %21 = vsyncpa [#allocation10], 0
    %s22 = scalar_lea.sflag [#allocation10], 1
    %23 = vsyncpa %s22, 0
    %24 = vsyncpa [#allocation5], 0
    %s25 = scalar_lea.sflag [#allocation5], 1
    %26 = vsyncpa %s25, 0
    loop: start=0, step=1, limit=6
    $region2: #{tpu_custom_call.1} parent=1 // loop_pre_header
      _
    $region3: #{tpu_custom_call.1} parent=1 // loop_header
      %s28 = sphi 0, %s32
      %p29 = scmp.ge.s32.totalorder %s28, 6
      %s35 = sphi 0, %s47
      %s36 = sphi 0, %s43
      %s37 = sphi 0, %s35
      %s38 = sphi 0, %s36
      %s39 = sphi 0, %s37
      %s40 = sphi 0, %s38
      %s50 = sphi 0, %s52
      %s53 = sphi 0, %s50
      %s54 = sphi 0, %s53
      %s70 = sphi 0, %s54
      %s76 = sphi 0, %s78
      %s79 = sphi 0, %s76
      %s80 = sphi 0, %s79
      %s96 = sphi 0, %s80
      %s102 = sphi 0, %s104
      %s105 = sphi 0, %s102
      %s106 = sphi 0, %s105
      %s122 = sphi 0, %s106
      %s128 = sphi 0, %s130
      %s131 = sphi 0, %s128
      %s132 = sphi 0, %s131
      %s148 = sphi 0, %s132
      %s154 = sphi 0, %s156
      %s157 = sphi 0, %s154
      %s158 = sphi 0, %s157
      %s174 = sphi 0, %s158
      %s180 = sphi 0, %s182
      %s183 = sphi 0, %s180
      %s184 = sphi 0, %s183
      %s200 = sphi 0, %s184
      %s206 = sphi 0, %s208
      %s209 = sphi 0, %s206
      %s210 = sphi 0, %s209
      %s226 = sphi 0, %s210
      %s232 = sphi 0, %s234
      %s235 = sphi 0, %s232
      %s236 = sphi 0, %s235
      %s252 = sphi 0, %s236
      %s256 = sphi 0, %s256
      %s258 = sphi 0, %s256
      %s259 = sphi 0, %s258
      %s273 = sphi 0, %s259
      %s277 = sphi 0, %s277
      %s279 = sphi 0, %s277
      %s280 = sphi 0, %s279
      %s294 = sphi 0, %s280
      %s300 = sphi 0, %s302
      %s303 = sphi 0, %s300
      %s304 = sphi 0, %s303
      %s320 = sphi 0, %s304
    $region4: #{tpu_custom_call.1} parent=1 // loop_header_branch
      %31 = sbr.rel (%p29) target = $region8
    $region5: #{tpu_custom_call.1} parent=1 // loop_body
      %s33 = ssub.s32 %s28, 1
      %s34 = ssub.s32 %s28, 2
      %s41 = sadd.s32 1, %s36
      %p42 = scmp.ge.s32.totalorder %s41, 2
      %s43 = scalar_select %p42, 0, %s41
      %s44 = sadd.s32 1, %s35
      %s45 = scalar_select %p42, %s44, %s35
      %p46 = scmp.ge.s32.totalorder %s45, 2
      %s47 = scalar_select %p46, 0, %s45
      %s48 = ssub.s32 %s35, %s47
      %p49 = scmp.eq.s32.totalorder %s48, 0
      %s51 = sadd.s32 %s50, 1
      %s52 = scalar_select %p49, %s50, %s51
      %p55 = pneg %p49
      %p56 = scmp.eq.s32.totalorder %s28, 3
      %p57 = por %p55, %p56
      %p58 = scmp.ne.s32.totalorder %s50, %s53
      %p59 = scmp.eq.s32.totalorder %s28, 0
      %p60 = por %p58, %p59
      %p61 = scmp.ne.s32.totalorder %s50, %s53
      %p62 = scmp.eq.s32.totalorder %s33, 3
      %p63 = por %p61, %p62
      %p64 = scmp.ne.s32.totalorder %s53, %s54
      %p65 = scmp.eq.s32.totalorder %s33, 0
      %p66 = por %p64, %p65
      %p67 = scmp.ne.s32.totalorder %s53, %s54
      %p68 = scmp.eq.s32.totalorder %s34, 3
      %p69 = por %p67, %p68
      %p71 = scmp.ne.s32.totalorder %s54, %s70
      %p72 = scmp.eq.s32.totalorder %s34, 0
      %p73 = por %p71, %p72
      %s74 = ssub.s32 %s35, %s47
      %p75 = scmp.eq.s32.totalorder %s74, 0
      %s77 = sadd.s32 %s76, 1
      %s78 = scalar_select %p75, %s76, %s77
      %p81 = pneg %p75
      %p82 = scmp.eq.s32.totalorder %s28, 3
      %p83 = por %p81, %p82
      %p84 = scmp.ne.s32.totalorder %s76, %s79
      %p85 = scmp.eq.s32.totalorder %s28, 0
      %p86 = por %p84, %p85
      %p87 = scmp.ne.s32.totalorder %s76, %s79
      %p88 = scmp.eq.s32.totalorder %s33, 3
      %p89 = por %p87, %p88
      %p90 = scmp.ne.s32.totalorder %s79, %s80
      %p91 = scmp.eq.s32.totalorder %s33, 0
      %p92 = por %p90, %p91
      %p93 = scmp.ne.s32.totalorder %s79, %s80
      %p94 = scmp.eq.s32.totalorder %s34, 3
      %p95 = por %p93, %p94
      %p97 = scmp.ne.s32.totalorder %s80, %s96
      %p98 = scmp.eq.s32.totalorder %s34, 0
      %p99 = por %p97, %p98
      %s100 = ssub.s32 %s35, %s47
      %p101 = scmp.eq.s32.totalorder %s100, 0
      %s103 = sadd.s32 %s102, 1
      %s104 = scalar_select %p101, %s102, %s103
      %p107 = pneg %p101
      %p108 = scmp.eq.s32.totalorder %s28, 3
      %p109 = por %p107, %p108
      %p110 = scmp.ne.s32.totalorder %s102, %s105
      %p111 = scmp.eq.s32.totalorder %s28, 0
      %p112 = por %p110, %p111
      %p113 = scmp.ne.s32.totalorder %s102, %s105
      %p114 = scmp.eq.s32.totalorder %s33, 3
      %p115 = por %p113, %p114
      %p116 = scmp.ne.s32.totalorder %s105, %s106
      %p117 = scmp.eq.s32.totalorder %s33, 0
      %p118 = por %p116, %p117
      %p119 = scmp.ne.s32.totalorder %s105, %s106
      %p120 = scmp.eq.s32.totalorder %s34, 3
      %p121 = por %p119, %p120
      %p123 = scmp.ne.s32.totalorder %s106, %s122
      %p124 = scmp.eq.s32.totalorder %s34, 0
      %p125 = por %p123, %p124
      %s126 = ssub.s32 %s36, %s43
      %p127 = scmp.eq.s32.totalorder %s126, 0
      %s129 = sadd.s32 %s128, 1
      %s130 = scalar_select %p127, %s128, %s129
      %p133 = pneg %p127
      %p134 = scmp.eq.s32.totalorder %s28, 3
      %p135 = por %p133, %p134
      %p136 = scmp.ne.s32.totalorder %s128, %s131
      %p137 = scmp.eq.s32.totalorder %s28, 0
      %p138 = por %p136, %p137
      %p139 = scmp.ne.s32.totalorder %s128, %s131
      %p140 = scmp.eq.s32.totalorder %s33, 3
      %p141 = por %p139, %p140
      %p142 = scmp.ne.s32.totalorder %s131, %s132
      %p143 = scmp.eq.s32.totalorder %s33, 0
      %p144 = por %p142, %p143
      %p145 = scmp.ne.s32.totalorder %s131, %s132
      %p146 = scmp.eq.s32.totalorder %s34, 3
      %p147 = por %p145, %p146
      %p149 = scmp.ne.s32.totalorder %s132, %s148
      %p150 = scmp.eq.s32.totalorder %s34, 0
      %p151 = por %p149, %p150
      %s152 = ssub.s32 %s36, %s43
      %p153 = scmp.eq.s32.totalorder %s152, 0
      %s155 = sadd.s32 %s154, 1
      %s156 = scalar_select %p153, %s154, %s155
      %p159 = pneg %p153
      %p160 = scmp.eq.s32.totalorder %s28, 3
      %p161 = por %p159, %p160
      %p162 = scmp.ne.s32.totalorder %s154, %s157
      %p163 = scmp.eq.s32.totalorder %s28, 0
      %p164 = por %p162, %p163
      %p165 = scmp.ne.s32.totalorder %s154, %s157
      %p166 = scmp.eq.s32.totalorder %s33, 3
      %p167 = por %p165, %p166
      %p168 = scmp.ne.s32.totalorder %s157, %s158
      %p169 = scmp.eq.s32.totalorder %s33, 0
      %p170 = por %p168, %p169
      %p171 = scmp.ne.s32.totalorder %s157, %s158
      %p172 = scmp.eq.s32.totalorder %s34, 3
      %p173 = por %p171, %p172
      %p175 = scmp.ne.s32.totalorder %s158, %s174
      %p176 = scmp.eq.s32.totalorder %s34, 0
      %p177 = por %p175, %p176
      %s178 = ssub.s32 %s36, %s43
      %p179 = scmp.eq.s32.totalorder %s178, 0
      %s181 = sadd.s32 %s180, 1
      %s182 = scalar_select %p179, %s180, %s181
      %p185 = pneg %p179
      %p186 = scmp.eq.s32.totalorder %s28, 3
      %p187 = por %p185, %p186
      %p188 = scmp.ne.s32.totalorder %s180, %s183
      %p189 = scmp.eq.s32.totalorder %s28, 0
      %p190 = por %p188, %p189
      %p191 = scmp.ne.s32.totalorder %s180, %s183
      %p192 = scmp.eq.s32.totalorder %s33, 3
      %p193 = por %p191, %p192
      %p194 = scmp.ne.s32.totalorder %s183, %s184
      %p195 = scmp.eq.s32.totalorder %s33, 0
      %p196 = por %p194, %p195
      %p197 = scmp.ne.s32.totalorder %s183, %s184
      %p198 = scmp.eq.s32.totalorder %s34, 3
      %p199 = por %p197, %p198
      %p201 = scmp.ne.s32.totalorder %s184, %s200
      %p202 = scmp.eq.s32.totalorder %s34, 0
      %p203 = por %p201, %p202
      %s204 = ssub.s32 %s36, %s43
      %p205 = scmp.eq.s32.totalorder %s204, 0
      %s207 = sadd.s32 %s206, 1
      %s208 = scalar_select %p205, %s206, %s207
      %p211 = pneg %p205
      %p212 = scmp.eq.s32.totalorder %s28, 3
      %p213 = por %p211, %p212
      %p214 = scmp.ne.s32.totalorder %s206, %s209
      %p215 = scmp.eq.s32.totalorder %s28, 0
      %p216 = por %p214, %p215
      %p217 = scmp.ne.s32.totalorder %s206, %s209
      %p218 = scmp.eq.s32.totalorder %s33, 3
      %p219 = por %p217, %p218
      %p220 = scmp.ne.s32.totalorder %s209, %s210
      %p221 = scmp.eq.s32.totalorder %s33, 0
      %p222 = por %p220, %p221
      %p223 = scmp.ne.s32.totalorder %s209, %s210
      %p224 = scmp.eq.s32.totalorder %s34, 3
      %p225 = por %p223, %p224
      %p227 = scmp.ne.s32.totalorder %s210, %s226
      %p228 = scmp.eq.s32.totalorder %s34, 0
      %p229 = por %p227, %p228
      %s230 = ssub.s32 %s36, %s43
      %p231 = scmp.eq.s32.totalorder %s230, 0
      %s233 = sadd.s32 %s232, 1
      %s234 = scalar_select %p231, %s232, %s233
      %p237 = pneg %p231
      %p238 = scmp.eq.s32.totalorder %s28, 3
      %p239 = por %p237, %p238
      %p240 = scmp.ne.s32.totalorder %s232, %s235
      %p241 = scmp.eq.s32.totalorder %s28, 0
      %p242 = por %p240, %p241
      %p243 = scmp.ne.s32.totalorder %s232, %s235
      %p244 = scmp.eq.s32.totalorder %s33, 3
      %p245 = por %p243, %p244
      %p246 = scmp.ne.s32.totalorder %s235, %s236
      %p247 = scmp.eq.s32.totalorder %s33, 0
      %p248 = por %p246, %p247
      %p249 = scmp.ne.s32.totalorder %s235, %s236
      %p250 = scmp.eq.s32.totalorder %s34, 3
      %p251 = por %p249, %p250
      %p253 = scmp.ne.s32.totalorder %s236, %s252
      %p254 = scmp.eq.s32.totalorder %s34, 0
      %p255 = por %p253, %p254
      %s257 = sadd.s32 %s256, 1
      %p260 = scmp.eq.s32.totalorder %s28, 3
      %p261 = scmp.ne.s32.totalorder %s256, %s258
      %p262 = scmp.eq.s32.totalorder %s28, 0
      %p263 = por %p261, %p262
      %p264 = scmp.ne.s32.totalorder %s256, %s258
      %p265 = scmp.eq.s32.totalorder %s33, 3
      %p266 = por %p264, %p265
      %p267 = scmp.ne.s32.totalorder %s258, %s259
      %p268 = scmp.eq.s32.totalorder %s33, 0
      %p269 = por %p267, %p268
      %p270 = scmp.ne.s32.totalorder %s258, %s259
      %p271 = scmp.eq.s32.totalorder %s34, 3
      %p272 = por %p270, %p271
      %p274 = scmp.ne.s32.totalorder %s259, %s273
      %p275 = scmp.eq.s32.totalorder %s34, 0
      %p276 = por %p274, %p275
      %s278 = sadd.s32 %s277, 1
      %p281 = scmp.eq.s32.totalorder %s28, 3
      %p282 = scmp.ne.s32.totalorder %s277, %s279
      %p283 = scmp.eq.s32.totalorder %s28, 0
      %p284 = por %p282, %p283
      %p285 = scmp.ne.s32.totalorder %s277, %s279
      %p286 = scmp.eq.s32.totalorder %s33, 3
      %p287 = por %p285, %p286
      %p288 = scmp.ne.s32.totalorder %s279, %s280
      %p289 = scmp.eq.s32.totalorder %s33, 0
      %p290 = por %p288, %p289
      %p291 = scmp.ne.s32.totalorder %s279, %s280
      %p292 = scmp.eq.s32.totalorder %s34, 3
      %p293 = por %p291, %p292
      %p295 = scmp.ne.s32.totalorder %s280, %s294
      %p296 = scmp.eq.s32.totalorder %s34, 0
      %p297 = por %p295, %p296
      %s298 = ssub.s32 %s35, %s47
      %p299 = scmp.eq.s32.totalorder %s298, 0
      %s301 = sadd.s32 %s300, 1
      %s302 = scalar_select %p299, %s300, %s301
      %p305 = pneg %p299
      %p306 = scmp.eq.s32.totalorder %s28, 3
      %p307 = por %p305, %p306
      %p308 = scmp.ne.s32.totalorder %s300, %s303
      %p309 = scmp.eq.s32.totalorder %s28, 0
      %p310 = por %p308, %p309
      %p311 = scmp.ne.s32.totalorder %s300, %s303
      %p312 = scmp.eq.s32.totalorder %s33, 3
      %p313 = por %p311, %p312
      %p314 = scmp.ne.s32.totalorder %s303, %s304
      %p315 = scmp.eq.s32.totalorder %s33, 0
      %p316 = por %p314, %p315
      %p317 = scmp.ne.s32.totalorder %s303, %s304
      %p318 = scmp.eq.s32.totalorder %s34, 3
      %p319 = por %p317, %p318
      %p321 = scmp.ne.s32.totalorder %s304, %s320
      %p322 = scmp.eq.s32.totalorder %s34, 0
      %p323 = por %p321, %p322
      %p324 = scmp.le.s32.totalorder 1, %s28
      %p325 = scmp.lt.s32.totalorder %s28, 5
      %p326 = pnand %p324, %p325
      %p327 = pneg %p326
      // Predicated region
      $region9: #{tpu_custom_call.1} parent=5 // pred_check
        _
      $region10: #{tpu_custom_call.1} parent=5 // pred_check_branch
        %329 = sbr.rel (%p326) target = $region12
      $region11: #{tpu_custom_call.1} parent=5 // pred_region
        %s330 = ssub.s32 %s28, 1
        // Predicated region
        $region13: #{tpu_custom_call.1} parent=11 // pred_check
          %p331 = pneg %p269
        $region14: #{tpu_custom_call.1} parent=11 // pred_check_branch
          %333 = sbr.rel (%p331) target = $region16
        $region15: #{tpu_custom_call.1} parent=11 // pred_region
          _
        $region16: #{tpu_custom_call.1} parent=11 // pred_fallthru
          _
        // Predicated region
        $region17: #{tpu_custom_call.1} parent=11 // pred_check
          %p334 = pneg %p290
        $region18: #{tpu_custom_call.1} parent=11 // pred_check_branch
          %336 = sbr.rel (%p334) target = $region20
        $region19: #{tpu_custom_call.1} parent=11 // pred_region
          _
        $region20: #{tpu_custom_call.1} parent=11 // pred_fallthru
          _
      $region12: #{tpu_custom_call.1} parent=5 // pred_fallthru
        _
      %p337 = scmp.lt.s32.totalorder %s28, 4
      // Predicated region
      $region21: #{tpu_custom_call.1} parent=5 // pred_check
        %p338 = pneg %p337
      $region22: #{tpu_custom_call.1} parent=5 // pred_check_branch
        %340 = sbr.rel (%p338) target = $region24
      $region23: #{tpu_custom_call.1} parent=5 // pred_region
        // Predicated region
        $region25: #{tpu_custom_call.1} parent=23 // pred_check
          %p341 = pneg %p60
        $region26: #{tpu_custom_call.1} parent=23 // pred_check_branch
          %343 = sbr.rel (%p341) target = $region28
        $region27: #{tpu_custom_call.1} parent=23 // pred_region
          %p344 = scmp.lt.s32.totalorder %s35, 1
          %s345 = scalar_select %p344, %s35, 1
          %s346 = smul.addr %s345, 8
          %s347 = scalar_lea.vmem %s0, %s346
        $region28: #{tpu_custom_call.1} parent=23 // pred_fallthru
          _
        // Predicated region
        $region29: #{tpu_custom_call.1} parent=23 // pred_check
          %p348 = pneg %p86
        $region30: #{tpu_custom_call.1} parent=23 // pred_check_branch
          %350 = sbr.rel (%p348) target = $region32
        $region31: #{tpu_custom_call.1} parent=23 // pred_region
          %p351 = scmp.lt.s32.totalorder %s35, 1
          %s352 = scalar_select %p351, %s35, 1
          %s353 = scalar_lea.vmem %s1, %s352
        $region32: #{tpu_custom_call.1} parent=23 // pred_fallthru
          _
        // Predicated region
        $region33: #{tpu_custom_call.1} parent=23 // pred_check
          %p354 = pneg %p112
        $region34: #{tpu_custom_call.1} parent=23 // pred_check_branch
          %356 = sbr.rel (%p354) target = $region36
        $region35: #{tpu_custom_call.1} parent=23 // pred_region
          %p357 = scmp.lt.s32.totalorder %s35, 1
          %s358 = scalar_select %p357, %s35, 1
          %s359 = smul.addr %s358, 8
          %s360 = scalar_lea.vmem %s2, %s359
        $region36: #{tpu_custom_call.1} parent=23 // pred_fallthru
          _
        // Predicated region
        $region37: #{tpu_custom_call.1} parent=23 // pred_check
          %p361 = pneg %p138
        $region38: #{tpu_custom_call.1} parent=23 // pred_check_branch
          %363 = sbr.rel (%p361) target = $region40
        $region39: #{tpu_custom_call.1} parent=23 // pred_region
          %s364 = sand.u32 %s128, 1
          %s365 = scalar_lea.sflag [#allocation4], %s364
          %s366 = sand.u32 %s128, 1
          %s367 = smul.addr %s366, 192
          %s368 = scalar_lea.vmem [#allocation3], %s367
          %s370 = ssub.s32 3072, 3072
          %371 = vsyncadd %s365, %s370
          %s372 = smul.addr %s36, 48
          %s373 = smul.addr %s372, 64
          %s374 = scalar_lea.hbm %s3, %s373
          %s375 = sshll.u32 %s368, 4
          %s376 = int_to_ptr.vmem [resolvable:$true] %s375
          %381 = dma.hbm_to_vmem [thread:$0]  %s374, 3072, %s376, %s365, 192, 192, 12
        $region40: #{tpu_custom_call.1} parent=23 // pred_fallthru
          _
        // Predicated region
        $region41: #{tpu_custom_call.1} parent=23 // pred_check
          %p382 = pneg %p164
        $region42: #{tpu_custom_call.1} parent=23 // pred_check_branch
          %384 = sbr.rel (%p382) target = $region44
        $region43: #{tpu_custom_call.1} parent=23 // pred_region
          %s385 = sand.u32 %s28, 1
          %s386 = scalar_lea.sflag [#allocation7], %s385
          %s387 = sand.u32 %s154, 1
          %s388 = smul.addr %s387, 64
          %s389 = scalar_lea.vmem [#allocation6], %s388
          %s391 = ssub.s32 1024, 1024
          %392 = vsyncadd %s386, %s391
          %s393 = smul.addr %s36, 16
          %s394 = smul.addr %s393, 64
          %s395 = scalar_lea.hbm %s4, %s394
          %s396 = sshll.u32 %s389, 4
          %s397 = int_to_ptr.vmem [resolvable:$true] %s396
          %402 = dma.hbm_to_vmem [thread:$0]  %s395, 1024, %s397, %s386, 64, 64, 4
        $region44: #{tpu_custom_call.1} parent=23 // pred_fallthru
          _
        // Predicated region
        $region45: #{tpu_custom_call.1} parent=23 // pred_check
          %p403 = pneg %p190
        $region46: #{tpu_custom_call.1} parent=23 // pred_check_branch
          %405 = sbr.rel (%p403) target = $region48
        $region47: #{tpu_custom_call.1} parent=23 // pred_region
          %s406 = sand.u32 %s28, 1
          %s407 = scalar_lea.sflag [#allocation7], %s406
          %s408 = sand.u32 %s180, 1
          %s409 = smul.addr %s408, 128
          %s410 = scalar_lea.vmem [#allocation8], %s409
          %s412 = ssub.s32 2048, 2048
          %413 = vsyncadd %s407, %s412
          %s414 = smul.addr %s36, 32
          %s415 = smul.addr %s414, 64
          %s416 = scalar_lea.hbm %s5, %s415
          %s417 = sshll.u32 %s410, 4
          %s418 = int_to_ptr.vmem [resolvable:$true] %s417
          %423 = dma.hbm_to_vmem [thread:$0]  %s416, 2048, %s418, %s407, 128, 128, 8
        $region48: #{tpu_custom_call.1} parent=23 // pred_fallthru
          _
        // Predicated region
        $region49: #{tpu_custom_call.1} parent=23 // pred_check
          %p424 = pneg %p216
        $region50: #{tpu_custom_call.1} parent=23 // pred_check_branch
          %426 = sbr.rel (%p424) target = $region52
        $region51: #{tpu_custom_call.1} parent=23 // pred_region
          %s427 = sand.u32 %s206, 1
          %s428 = scalar_lea.sflag [#allocation10], %s427
          %s429 = sand.u32 %s206, 1
          %s430 = smul.addr %s429, 128
          %s431 = scalar_lea.vmem [#allocation9], %s430
          %s433 = ssub.s32 2048, 2048
          %434 = vsyncadd %s428, %s433
          %s435 = smul.addr %s36, 32
          %s436 = smul.addr %s435, 64
          %s437 = scalar_lea.hbm %s6, %s436
          %s438 = sshll.u32 %s431, 4
          %s439 = int_to_ptr.vmem [resolvable:$true] %s438
          %444 = dma.hbm_to_vmem [thread:$0]  %s437, 2048, %s439, %s428, 64, 64, 4
        $region52: #{tpu_custom_call.1} parent=23 // pred_fallthru
          _
        // Predicated region
        $region53: #{tpu_custom_call.1} parent=23 // pred_check
          %p445 = pneg %p242
        $region54: #{tpu_custom_call.1} parent=23 // pred_check_branch
          %447 = sbr.rel (%p445) target = $region56
        $region55: #{tpu_custom_call.1} parent=23 // pred_region
          %p448 = scmp.lt.s32.totalorder %s36, 1
          %s449 = scalar_select %p448, %s36, 1
          %s450 = smul.addr %s449, 2
          %s451 = smul.addr %s450, 8
          %s452 = scalar_lea.vmem %s7, %s451
        $region56: #{tpu_custom_call.1} parent=23 // pred_fallthru
          _
      $region24: #{tpu_custom_call.1} parent=5 // pred_fallthru
        _
      %p453 = scmp.le.s32.totalorder 1, %s28
      %p454 = scmp.lt.s32.totalorder %s28, 5
      %p455 = pnand %p453, %p454
      %p456 = pneg %p455
      // Predicated region
      $region57: #{tpu_custom_call.1} parent=5 // pred_check
        _
      $region58: #{tpu_custom_call.1} parent=5 // pred_check_branch
        %458 = sbr.rel (%p455) target = $region60
      $region59: #{tpu_custom_call.1} parent=5 // pred_region
        %s459 = ssub.s32 %s28, 1
        %s460 = sand.u32 %s131, 1
        %s461 = scalar_lea.sflag [#allocation4], %s460
        %s462 = sand.u32 %s131, 1
        %s463 = smul.addr %s462, 192
        %s464 = scalar_lea.vmem [#allocation3], %s463
        // Predicated region
        $region61: #{tpu_custom_call.1} parent=59 // pred_check
          %p465 = pneg %p144
        $region62: #{tpu_custom_call.1} parent=59 // pred_check_branch
          %467 = sbr.rel (%p465) target = $region64
        $region63: #{tpu_custom_call.1} parent=59 // pred_region
          %468 = dma.done %s461, 3072
        $region64: #{tpu_custom_call.1} parent=59 // pred_fallthru
          _
        %s469 = sand.u32 %s33, 1
        %s470 = scalar_lea.sflag [#allocation7], %s469
        %s471 = sand.u32 %s157, 1
        %s472 = smul.addr %s471, 64
        %s473 = scalar_lea.vmem [#allocation6], %s472
        // Predicated region
        $region65: #{tpu_custom_call.1} parent=59 // pred_check
          %p474 = pneg %p170
        $region66: #{tpu_custom_call.1} parent=59 // pred_check_branch
          %476 = sbr.rel (%p474) target = $region68
        $region67: #{tpu_custom_call.1} parent=59 // pred_region
          %477 = dma.done %s470, 1024
        $region68: #{tpu_custom_call.1} parent=59 // pred_fallthru
          _
        %s478 = sand.u32 %s33, 1
        %s479 = scalar_lea.sflag [#allocation7], %s478
        %s480 = sand.u32 %s183, 1
        %s481 = smul.addr %s480, 128
        %s482 = scalar_lea.vmem [#allocation8], %s481
        // Predicated region
        $region69: #{tpu_custom_call.1} parent=59 // pred_check
          %p483 = pneg %p196
        $region70: #{tpu_custom_call.1} parent=59 // pred_check_branch
          %485 = sbr.rel (%p483) target = $region72
        $region71: #{tpu_custom_call.1} parent=59 // pred_region
          %486 = dma.done %s479, 2048
        $region72: #{tpu_custom_call.1} parent=59 // pred_fallthru
          _
        %s487 = sand.u32 %s209, 1
        %s488 = scalar_lea.sflag [#allocation10], %s487
        %s489 = sand.u32 %s209, 1
        %s490 = smul.addr %s489, 128
        %s491 = scalar_lea.vmem [#allocation9], %s490
        // Predicated region
        $region73: #{tpu_custom_call.1} parent=59 // pred_check
          %p492 = pneg %p222
        $region74: #{tpu_custom_call.1} parent=59 // pred_check_branch
          %494 = sbr.rel (%p492) target = $region76
        $region75: #{tpu_custom_call.1} parent=59 // pred_region
          %495 = dma.done %s488, 2048
        $region76: #{tpu_custom_call.1} parent=59 // pred_fallthru
          _
        %p496 = scmp.lt.s32.totalorder %s37, 1
        %s497 = scalar_select %p496, %s37, 1
        %s498 = smul.addr %s497, 8
        %s499 = scalar_lea.vmem %s0, %s498
        %p500 = pneg %p66
        %p501 = pneg %p63
        %p502 = scmp.lt.s32.totalorder %s37, 1
        %s503 = scalar_select %p502, %s37, 1
        %s504 = scalar_lea.vmem %s1, %s503
        %p505 = pneg %p92
        %p506 = pneg %p89
        %p507 = scmp.lt.s32.totalorder %s37, 1
        %s508 = scalar_select %p507, %s37, 1
        %s509 = smul.addr %s508, 8
        %s510 = scalar_lea.vmem %s2, %s509
        %p511 = pneg %p118
        %p512 = pneg %p115
        %s513 = sand.u32 %s131, 1
        %s514 = scalar_lea.sflag [#allocation4], %s513
        %s515 = sand.u32 %s131, 1
        %s516 = smul.addr %s515, 192
        %s517 = scalar_lea.vmem [#allocation3], %s516
        %p518 = pneg %p144
        %p519 = pneg %p141
        %s520 = sand.u32 %s33, 1
        %s521 = scalar_lea.sflag [#allocation7], %s520
        %s522 = sand.u32 %s157, 1
        %s523 = smul.addr %s522, 64
        %s524 = scalar_lea.vmem [#allocation6], %s523
        %p525 = pneg %p170
        %p526 = pneg %p167
        %s527 = sand.u32 %s33, 1
        %s528 = scalar_lea.sflag [#allocation7], %s527
        %s529 = sand.u32 %s183, 1
        %s530 = smul.addr %s529, 128
        %s531 = scalar_lea.vmem [#allocation8], %s530
        %p532 = pneg %p196
        %p533 = pneg %p193
        %s534 = sand.u32 %s209, 1
        %s535 = scalar_lea.sflag [#allocation10], %s534
        %s536 = sand.u32 %s209, 1
        %s537 = smul.addr %s536, 128
        %s538 = scalar_lea.vmem [#allocation9], %s537
        %p539 = pneg %p222
        %p540 = pneg %p219
        %p541 = scmp.lt.s32.totalorder %s38, 1
        %s542 = scalar_select %p541, %s38, 1
        %s543 = smul.addr %s542, 2
        %s544 = smul.addr %s543, 8
        %s545 = scalar_lea.vmem %s7, %s544
        %p546 = pneg %p248
        %p547 = pneg %p245
        %p548 = pneg %p269
        %p549 = pneg %p266
        %p550 = pneg %p290
        %p551 = pneg %p287
        %p552 = pneg %p316
        %p553 = pneg %p313
        %s554 = sand.u32 %s303, 1
        %s555 = scalar_lea.sflag [#allocation5], %s554
        %s556 = sand.u32 %s303, 1
        %s557 = scalar_lea.vmem [#allocation11], %s556
        %p558 = scmp.lt.s32.totalorder %s37, 1
        %s559 = scalar_select %p558, %s37, 1
        %s560 = smul.addr %s559, 8
        %s561 = scalar_lea.vmem %s0, %s560
        %p562 = scmp.lt.s32.totalorder %s37, 1
        %s563 = scalar_select %p562, %s37, 1
        %s564 = scalar_lea.vmem %s1, %s563
        %p565 = scmp.lt.s32.totalorder %s37, 1
        %s566 = scalar_select %p565, %s37, 1
        %s567 = smul.addr %s566, 8
        %s568 = scalar_lea.vmem %s2, %s567
        %p569 = scmp.lt.s32.totalorder %s38, 1
        %s570 = scalar_select %p569, %s38, 1
        %s571 = smul.addr %s570, 2
        %s572 = smul.addr %s571, 8
        %s573 = scalar_lea.vmem %s7, %s572
        %p575 = scmp.eq.s32.totalorder %s38, 0
        // Predicated region
        $region77: #{tpu_custom_call.1} parent=59 // pred_check
          %p576 = pneg %p575
        $region78: #{tpu_custom_call.1} parent=59 // pred_check_branch
          %578 = sbr.rel (%p576) target = $region80
        $region79: #{tpu_custom_call.1} parent=59 // pred_region
          %v579 = vld [vmem:[%s561] sm:$0xff]
          %580 = vst [vmem:[#allocation2] sm:$0xff] %v579
        $region80: #{tpu_custom_call.1} parent=59 // pred_fallthru
          _
        %v581 = vld [vmem:[%s573] sm:$0xff]
        %v582 = vld [vmem:[%s573 + $0x8] sm:$0x7]
        %v584 = vrot.slane %v581, 1
        %v586 = vld [vmem:[#allocation2] sm:$0xff]
        %v587 = vpack.c.bf16 %v586, %v586
        %v588 = vld [vmem:[%s464] sm:$0xff]
        %v589 = vld [vmem:[%s464 + $0x8] sm:$0xf]
        %v590 = vld [vmem:[%s464 + $0xc] sm:$0xff]
        %v591 = vld [vmem:[%s464 + $0x14] sm:$0xf]
        %v592 = vld [vmem:[%s464 + $0x18] sm:$0xff]
        %v593 = vld [vmem:[%s464 + $0x20] sm:$0xf]
        %v594 = vld [vmem:[%s464 + $0x24] sm:$0xff]
        %v595 = vld [vmem:[%s464 + $0x2c] sm:$0xf]
        %v596 = vld [vmem:[%s464 + $0x30] sm:$0xff]
        %v597 = vld [vmem:[%s464 + $0x38] sm:$0xf]
        %v598 = vld [vmem:[%s464 + $0x3c] sm:$0xff]
        %v599 = vld [vmem:[%s464 + $0x44] sm:$0xf]
        %v600 = vld [vmem:[%s464 + $0x48] sm:$0xff]
        %v601 = vld [vmem:[%s464 + $0x50] sm:$0xf]
        %v602 = vld [vmem:[%s464 + $0x54] sm:$0xff]
        %v603 = vld [vmem:[%s464 + $0x5c] sm:$0xf]
        %v604 = vld [vmem:[%s464 + $0x60] sm:$0xff]
        %v605 = vld [vmem:[%s464 + $0x68] sm:$0xf]
        %v606 = vld [vmem:[%s464 + $0x6c] sm:$0xff]
        %v607 = vld [vmem:[%s464 + $0x74] sm:$0xf]
        %v608 = vld [vmem:[%s464 + $0x78] sm:$0xff]
        %v609 = vld [vmem:[%s464 + $0x80] sm:$0xf]
        %v610 = vld [vmem:[%s464 + $0x84] sm:$0xff]
        %v611 = vld [vmem:[%s464 + $0x8c] sm:$0xf]
        %v612 = vld [vmem:[%s464 + $0x90] sm:$0xff]
        %v613 = vld [vmem:[%s464 + $0x98] sm:$0xf]
        %v614 = vld [vmem:[%s464 + $0x9c] sm:$0xff]
        %v615 = vld [vmem:[%s464 + $0xa4] sm:$0xf]
        %v616 = vld [vmem:[%s464 + $0xa8] sm:$0xff]
        %v617 = vld [vmem:[%s464 + $0xb0] sm:$0xf]
        %v618 = vld [vmem:[%s464 + $0xb4] sm:$0xff]
        %v619 = vld [vmem:[%s464 + $0xbc] sm:$0xf]
        %v652 = vunpack.c.l.b16 %v588
        %v653 = vunpack.c.h.b16 %v588
        %v654 = vunpack.c.l.b16 %v589
        %v655 = vunpack.c.l.b16 %v590
        %v656 = vunpack.c.h.b16 %v590
        %v657 = vunpack.c.l.b16 %v591
        %v658 = vunpack.c.l.b16 %v592
        %v659 = vunpack.c.h.b16 %v592
        %v660 = vunpack.c.l.b16 %v593
        %v661 = vunpack.c.l.b16 %v594
        %v662 = vunpack.c.h.b16 %v594
        %v663 = vunpack.c.l.b16 %v595
        %v664 = vunpack.c.l.b16 %v596
        %v665 = vunpack.c.h.b16 %v596
        %v666 = vunpack.c.l.b16 %v597
        %v667 = vunpack.c.l.b16 %v598
        %v668 = vunpack.c.h.b16 %v598
        %v669 = vunpack.c.l.b16 %v599
        %v670 = vunpack.c.l.b16 %v600
        %v671 = vunpack.c.h.b16 %v600
        %v672 = vunpack.c.l.b16 %v601
        %v673 = vunpack.c.l.b16 %v602
        %v674 = vunpack.c.h.b16 %v602
        %v675 = vunpack.c.l.b16 %v603
        %v676 = vunpack.c.l.b16 %v604
        %v677 = vunpack.c.h.b16 %v604
        %v678 = vunpack.c.l.b16 %v605
        %v679 = vunpack.c.l.b16 %v606
        %v680 = vunpack.c.h.b16 %v606
        %v681 = vunpack.c.l.b16 %v607
        %v682 = vunpack.c.l.b16 %v608
        %v683 = vunpack.c.h.b16 %v608
        %v684 = vunpack.c.l.b16 %v609
        %v685 = vunpack.c.l.b16 %v610
        %v686 = vunpack.c.h.b16 %v610
        %v687 = vunpack.c.l.b16 %v611
        %v688 = vunpack.c.l.b16 %v612
        %v689 = vunpack.c.h.b16 %v612
        %v690 = vunpack.c.l.b16 %v613
        %v691 = vunpack.c.l.b16 %v614
        %v692 = vunpack.c.h.b16 %v614
        %v693 = vunpack.c.l.b16 %v615
        %v694 = vunpack.c.l.b16 %v616
        %v695 = vunpack.c.h.b16 %v616
        %v696 = vunpack.c.l.b16 %v617
        %v697 = vunpack.c.l.b16 %v618
        %v698 = vunpack.c.h.b16 %v618
        %v699 = vunpack.c.l.b16 %v619
        %v700 = vpack.c.b16 %v655, %v652
        %v701 = vpack.c.b16 %v656, %v653
        %v702 = vpack.c.b16 %v657, %v654
        %v703 = vpack.c.b16 %v661, %v658
        %v704 = vpack.c.b16 %v662, %v659
        %v705 = vpack.c.b16 %v663, %v660
        %v706 = vpack.c.b16 %v667, %v664
        %v707 = vpack.c.b16 %v668, %v665
        %v708 = vpack.c.b16 %v669, %v666
        %v709 = vpack.c.b16 %v673, %v670
        %v710 = vpack.c.b16 %v674, %v671
        %v711 = vpack.c.b16 %v675, %v672
        %v712 = vpack.c.b16 %v679, %v676
        %v713 = vpack.c.b16 %v680, %v677
        %v714 = vpack.c.b16 %v681, %v678
        %v715 = vpack.c.b16 %v685, %v682
        %v716 = vpack.c.b16 %v686, %v683
        %v717 = vpack.c.b16 %v687, %v684
        %v718 = vpack.c.b16 %v691, %v688
        %v719 = vpack.c.b16 %v692, %v689
        %v720 = vpack.c.b16 %v693, %v690
        %v721 = vpack.c.b16 %v697, %v694
        %v722 = vpack.c.b16 %v698, %v695
        %v723 = vpack.c.b16 %v699, %v696
        %748 = vmatprep.subr.bf16.mxu0 %v701
        %749 = vmatpush1.bf16.msra.mxu0 %v700
        %750 = vmatprep.subr.bf16.mxu0 %v704
        %751 = vmatpush1.bf16.msra.mxu0 %v703
        %752 = vmatprep.subr.bf16.mxu0 %v707
        %753 = vmatpush1.bf16.msra.mxu0 %v706
        %754 = vmatprep.subr.bf16.mxu0 %v710
        %755 = vmatpush1.bf16.msra.mxu0 %v709
        %756 = vmatprep.subr.bf16.mxu0 %v713
        %757 = vmatpush1.bf16.msra.mxu0 %v712
        %758 = vmatprep.subr.bf16.mxu0 %v716
        %759 = vmatpush1.bf16.msra.mxu0 %v715
        %760 = vmatprep.subr.bf16.mxu0 %v719
        %761 = vmatpush1.bf16.msra.mxu0 %v718
        %762 = vmatprep.subr.bf16.mxu0 %v722
        %763 = vmatpush1.bf16.msra.mxu0 %v721
        %764 = vmatprep.subr.bf16.mxu0 0
        %765 = vmatpush1.bf16.msra.mxu0 0
        %766 = vmatprep.subr.bf16.mxu0 0
        %767 = vmatpush1.bf16.msra.mxu0 0
        %768 = vmatprep.subr.bf16.mxu0 0
        %769 = vmatpush1.bf16.msra.mxu0 0
        %770 = vmatprep.subr.bf16.mxu0 0
        %771 = vmatpush1.bf16.msra.mxu0 0
        %772 = vmatprep.subr.bf16.mxu0 0
        %773 = vmatpush1.bf16.msra.mxu0 0
        %774 = vmatprep.subr.bf16.mxu0 0
        %775 = vmatpush1.bf16.msra.mxu0 0
        %776 = vmatprep.subr.bf16.mxu0 0
        %777 = vmatpush1.bf16.msra.mxu0 0
        %778 = vmatprep.subr.bf16.mxu0 0
        %779 = vmatpush1.bf16.msra.mxu0 0
        %780 = vmatprep.mubr.bf16.mxu0 0
        %781 = vmatmul.mubr.bf16.gmra.mrb[0].mxu0 %v587
        %v782 = vpop.f32.mrb[0].mxu0
        %v783 = vadd.f32 0.0, %v782
        %v784 = vpop.f32.mrb[0].mxu0
        %v785 = vadd.f32 0.0, %v784
        %v786 = vpop.f32.mrb[0].mxu0
        %v787 = vpop.f32.mrb[0].mxu0
        %788 = vdwg.mxu0
        %789 = vmatprep.subr.bf16.mxu0 0
        %790 = vmatpush1.bf16.msra.mxu0 %v702
        %791 = vmatprep.subr.bf16.mxu0 0
        %792 = vmatpush1.bf16.msra.mxu0 %v705
        %793 = vmatprep.subr.bf16.mxu0 0
        %794 = vmatpush1.bf16.msra.mxu0 %v708
        %795 = vmatprep.subr.bf16.mxu0 0
        %796 = vmatpush1.bf16.msra.mxu0 %v711
        %797 = vmatprep.subr.bf16.mxu0 0
        %798 = vmatpush1.bf16.msra.mxu0 %v714
        %799 = vmatprep.subr.bf16.mxu0 0
        %800 = vmatpush1.bf16.msra.mxu0 %v717
        %801 = vmatprep.subr.bf16.mxu0 0
        %802 = vmatpush1.bf16.msra.mxu0 %v720
        %803 = vmatprep.subr.bf16.mxu0 0
        %804 = vmatpush1.bf16.msra.mxu0 %v723
        %805 = vmatprep.subr.bf16.mxu0 0
        %806 = vmatpush1.bf16.msra.mxu0 0
        %807 = vmatprep.subr.bf16.mxu0 0
        %808 = vmatpush1.bf16.msra.mxu0 0
        %809 = vmatprep.subr.bf16.mxu0 0
        %810 = vmatpush1.bf16.msra.mxu0 0
        %811 = vmatprep.subr.bf16.mxu0 0
        %812 = vmatpush1.bf16.msra.mxu0 0
        %813 = vmatprep.subr.bf16.mxu0 0
        %814 = vmatpush1.bf16.msra.mxu0 0
        %815 = vmatprep.subr.bf16.mxu0 0
        %816 = vmatpush1.bf16.msra.mxu0 0
        %817 = vmatprep.subr.bf16.mxu0 0
        %818 = vmatpush1.bf16.msra.mxu0 0
        %819 = vmatprep.subr.bf16.mxu0 0
        %820 = vmatpush1.bf16.msra.mxu0 0
        %821 = vmatprep.mubr.bf16.mxu0 0
        %822 = vmatmul.mubr.bf16.gmra.mrb[0].mxu0 %v587
        %v823 = vpop.f32.mrb[0].mxu0
        %v824 = vadd.f32 0.0, %v823
        %v825 = vpop.f32.mrb[0].mxu0
        %v826 = vpop.f32.mrb[0].mxu0
        %v827 = vpop.f32.mrb[0].mxu0
        %828 = vdwg.mxu0
        %v829 = vlaneseq
        %v830 = vshrl.u32 %v829, 7
        %v831 = vsub.s32 0, %v830
        %v832 = vrot.slane %v581, %v831
        %v833 = vadd.f32 %v783, %v832
        %v834 = vlaneseq
        %v835 = vshrl.u32 %v834, 7
        %v836 = vsub.s32 1, %v835
        %v837 = vrot.slane %v581, %v836
        %v838 = vadd.f32 %v785, %v837
        %v839 = vlaneseq
        %v840 = vshrl.u32 %v839, 7
        %v841 = vsub.s32 2, %v840
        %v842 = vrot.slane %v581, %v841
        %v843 = vadd.f32 %v824, %v842
        %v844 = vld [vmem:[%s564] sm:$0x1]
        %v846 = vlaneseq
        %v847 = vshrl.u32 %v846, 7
        %v848 = vsub.s32 0, %v847
        %v849 = vrot.slane %v844, %v848
        %v851 = vpack.c.bf16 %v833, %v833
        %v852 = vpack.c.bf16 %v838, %v838
        %v853 = vpack.c.bf16 %v843, %v843
        %vm854 = vcmask 261120
        %v856 = vsel %vm854, %v851, 0
        %v859 = vsel %vm854, %v852, 0
        %861 = vmatprep.subr.bf16.mxu0 0
        %862 = vmatpush1.bf16.xpose.msra.mxu0 %v859
        %863 = vmatprep.subr.bf16.mxu0 0
        %864 = vmatpush1.bf16.xpose.msra.mxu0 0
        %865 = vmatprep.subr.bf16.mxu0 0
        %866 = vmatpush1.bf16.xpose.msra.mxu0 0
        %867 = vmatprep.subr.bf16.mxu0 0
        %868 = vmatpush1.bf16.xpose.msra.mxu0 0
        %869 = vmatprep.subr.bf16.mxu0 0
        %870 = vmatpush1.bf16.xpose.msra.mxu0 0
        %871 = vmatprep.subr.bf16.mxu0 0
        %872 = vmatpush1.bf16.xpose.msra.mxu0 0
        %873 = vmatprep.subr.bf16.mxu0 0
        %874 = vmatpush1.bf16.xpose.msra.mxu0 0
        %875 = vmatprep.subr.bf16.mxu0 0
        %876 = vmatpush1.bf16.xpose.msra.mxu0 0
        %877 = vmatprep.subr.bf16.mxu0 0
        %878 = vmatpush1.bf16.xpose.msra.mxu0 0
        %879 = vmatprep.subr.bf16.mxu0 0
        %880 = vmatpush1.bf16.xpose.msra.mxu0 0
        %881 = vmatprep.subr.bf16.mxu0 0
        %882 = vmatpush1.bf16.xpose.msra.mxu0 0
        %883 = vmatprep.subr.bf16.mxu0 0
        %884 = vmatpush1.bf16.xpose.msra.mxu0 0
        %885 = vmatprep.subr.bf16.mxu0 0
        %886 = vmatpush1.bf16.xpose.msra.mxu0 0
        %887 = vmatprep.subr.bf16.mxu0 0
        %888 = vmatpush1.bf16.xpose.msra.mxu0 0
        %889 = vmatprep.subr.bf16.mxu0 0
        %890 = vmatpush1.bf16.xpose.msra.mxu0 0
        %891 = vmatprep.subr.bf16.mxu0 0
        %892 = vmatpush1.bf16.xpose.msra.mxu0 0
        %893 = vmatprep.mubr.bf16.mxu0 0
        %894 = vmatmul.mubr.bf16.gmra.mrb[0].mxu0 %v856
        %v895 = vpop.f32.mrb[0].mxu0
        %v896 = vadd.f32 %v849, %v895
        %v897 = vpop.f32.mrb[0].mxu0
        %v898 = vpop.f32.mrb[0].mxu0
        %v899 = vpop.f32.mrb[0].mxu0
        %900 = vdwg.mxu0
        %vm901 = vcmask 64512
        %v902 = vsel %vm901, %v896, -inf
        %903 = vmax.xlane.f32.xlu0 %v902
        %v904 = vpop.xlane.xlu0 %903
        %v905 = vsub.f32 %v896, %v904
        %v906 = vmul.f32 %v905, 1.442695
        %v907 = vpow.pop %v906
        %v908 = vsel %vm901, %v907, 0.0
        %909 = vadd.xlane.f32.xlu0 %v908
        %v910 = vpop.xlane.xlu0 %909
        %v911 = vrcp.pop %v910
        %v912 = vmul.f32 %v907, %v911
        %v913 = vpack.c.bf16 %v912, %v912
        %v915 = vsel %vm901, %v913, 0
        %vm917 = vcmask 1043456
        %v919 = vsel %vm917, %v853, 0
        %921 = vmatprep.subr.bf16.mxu0 0
        %922 = vmatpush1.bf16.msra.mxu0 %v919
        %923 = vmatprep.subr.bf16.mxu0 0
        %924 = vmatpush1.bf16.msra.mxu0 0
        %925 = vmatprep.subr.bf16.mxu0 0
        %926 = vmatpush1.bf16.msra.mxu0 0
        %927 = vmatprep.subr.bf16.mxu0 0
        %928 = vmatpush1.bf16.msra.mxu0 0
        %929 = vmatprep.subr.bf16.mxu0 0
        %930 = vmatpush1.bf16.msra.mxu0 0
        %931 = vmatprep.subr.bf16.mxu0 0
        %932 = vmatpush1.bf16.msra.mxu0 0
        %933 = vmatprep.subr.bf16.mxu0 0
        %934 = vmatpush1.bf16.msra.mxu0 0
        %935 = vmatprep.subr.bf16.mxu0 0
        %936 = vmatpush1.bf16.msra.mxu0 0
        %937 = vmatprep.subr.bf16.mxu0 0
        %938 = vmatpush1.bf16.msra.mxu0 0
        %939 = vmatprep.subr.bf16.mxu0 0
        %940 = vmatpush1.bf16.msra.mxu0 0
        %941 = vmatprep.subr.bf16.mxu0 0
        %942 = vmatpush1.bf16.msra.mxu0 0
        %943 = vmatprep.subr.bf16.mxu0 0
        %944 = vmatpush1.bf16.msra.mxu0 0
        %945 = vmatprep.subr.bf16.mxu0 0
        %946 = vmatpush1.bf16.msra.mxu0 0
        %947 = vmatprep.subr.bf16.mxu0 0
        %948 = vmatpush1.bf16.msra.mxu0 0
        %949 = vmatprep.subr.bf16.mxu0 0
        %950 = vmatpush1.bf16.msra.mxu0 0
        %951 = vmatprep.subr.bf16.mxu0 0
        %952 = vmatpush1.bf16.msra.mxu0 0
        %953 = vmatprep.mubr.bf16.mxu0 0
        %954 = vmatmul.mubr.bf16.gmra.mrb[0].mxu0 %v915
        %v955 = vpop.f32.mrb[0].mxu0
        %v956 = vadd.f32 0.0, %v955
        %v957 = vpop.f32.mrb[0].mxu0
        %v958 = vpop.f32.mrb[0].mxu0
        %v959 = vpop.f32.mrb[0].mxu0
        %960 = vdwg.mxu0
        %v961 = vpack.c.bf16 %v956, %v956
        %963 = vrot.lane.b32.xlu0 %v851, 96
        %v964 = vpop.permute.xlu0 %963
        %966 = vrot.lane.b32.xlu0 %v852, 96
        %v967 = vpop.permute.xlu0 %966
        %v969 = vsel %vm854, %v964, 0
        %v972 = vsel %vm854, %v967, 0
        %974 = vmatprep.subr.bf16.mxu0 0
        %975 = vmatpush1.bf16.xpose.msra.mxu0 %v972
        %976 = vmatprep.subr.bf16.mxu0 0
        %977 = vmatpush1.bf16.xpose.msra.mxu0 0
        %978 = vmatprep.subr.bf16.mxu0 0
        %979 = vmatpush1.bf16.xpose.msra.mxu0 0
        %980 = vmatprep.subr.bf16.mxu0 0
        %981 = vmatpush1.bf16.xpose.msra.mxu0 0
        %982 = vmatprep.subr.bf16.mxu0 0
        %983 = vmatpush1.bf16.xpose.msra.mxu0 0
        %984 = vmatprep.subr.bf16.mxu0 0
        %985 = vmatpush1.bf16.xpose.msra.mxu0 0
        %986 = vmatprep.subr.bf16.mxu0 0
        %987 = vmatpush1.bf16.xpose.msra.mxu0 0
        %988 = vmatprep.subr.bf16.mxu0 0
        %989 = vmatpush1.bf16.xpose.msra.mxu0 0
        %990 = vmatprep.subr.bf16.mxu0 0
        %991 = vmatpush1.bf16.xpose.msra.mxu0 0
        %992 = vmatprep.subr.bf16.mxu0 0
        %993 = vmatpush1.bf16.xpose.msra.mxu0 0
        %994 = vmatprep.subr.bf16.mxu0 0
        %995 = vmatpush1.bf16.xpose.msra.mxu0 0
        %996 = vmatprep.subr.bf16.mxu0 0
        %997 = vmatpush1.bf16.xpose.msra.mxu0 0
        %998 = vmatprep.subr.bf16.mxu0 0
        %999 = vmatpush1.bf16.xpose.msra.mxu0 0
        %1000 = vmatprep.subr.bf16.mxu0 0
        %1001 = vmatpush1.bf16.xpose.msra.mxu0 0
        %1002 = vmatprep.subr.bf16.mxu0 0
        %1003 = vmatpush1.bf16.xpose.msra.mxu0 0
        %1004 = vmatprep.subr.bf16.mxu0 0
        %1005 = vmatpush1.bf16.xpose.msra.mxu0 0
        %1006 = vmatprep.mubr.bf16.mxu0 0
        %1007 = vmatmul.mubr.bf16.gmra.mrb[0].mxu0 %v969
        %v1008 = vpop.f32.mrb[0].mxu0
        %v1009 = vadd.f32 %v849, %v1008
        %v1010 = vpop.f32.mrb[0].mxu0
        %v1011 = vpop.f32.mrb[0].mxu0
        %v1012 = vpop.f32.mrb[0].mxu0
        %1013 = vdwg.mxu0
        %v1014 = vsel %vm901, %v1009, -inf
        %1015 = vmax.xlane.f32.xlu0 %v1014
        %v1016 = vpop.xlane.xlu0 %1015
        %v1017 = vsub.f32 %v1009, %v1016
        %v1018 = vmul.f32 %v1017, 1.442695
        %v1019 = vpow.pop %v1018
        %v1020 = vsel %vm901, %v1019, 0.0
        %1021 = vadd.xlane.f32.xlu0 %v1020
        %v1022 = vpop.xlane.xlu0 %1021
        %v1023 = vrcp.pop %v1022
        %v1024 = vmul.f32 %v1019, %v1023
        %v1025 = vpack.c.bf16 %v1024, %v1024
        %1027 = vrot.lane.b32.xlu0 %v853, 96
        %v1028 = vpop.permute.xlu0 %1027
        %v1030 = vsel %vm901, %v1025, 0
        %v1033 = vsel %vm917, %v1028, 0
        %1035 = vmatprep.subr.bf16.mxu0 0
        %1036 = vmatpush1.bf16.msra.mxu0 %v1033
        %1037 = vmatprep.subr.bf16.mxu0 0
        %1038 = vmatpush1.bf16.msra.mxu0 0
        %1039 = vmatprep.subr.bf16.mxu0 0
        %1040 = vmatpush1.bf16.msra.mxu0 0
        %1041 = vmatprep.subr.bf16.mxu0 0
        %1042 = vmatpush1.bf16.msra.mxu0 0
        %1043 = vmatprep.subr.bf16.mxu0 0
        %1044 = vmatpush1.bf16.msra.mxu0 0
        %1045 = vmatprep.subr.bf16.mxu0 0
        %1046 = vmatpush1.bf16.msra.mxu0 0
        %1047 = vmatprep.subr.bf16.mxu0 0
        %1048 = vmatpush1.bf16.msra.mxu0 0
        %1049 = vmatprep.subr.bf16.mxu0 0
        %1050 = vmatpush1.bf16.msra.mxu0 0
        %1051 = vmatprep.subr.bf16.mxu0 0
        %1052 = vmatpush1.bf16.msra.mxu0 0
        %1053 = vmatprep.subr.bf16.mxu0 0
        %1054 = vmatpush1.bf16.msra.mxu0 0
        %1055 = vmatprep.subr.bf16.mxu0 0
        %1056 = vmatpush1.bf16.msra.mxu0 0
        %1057 = vmatprep.subr.bf16.mxu0 0
        %1058 = vmatpush1.bf16.msra.mxu0 0
        %1059 = vmatprep.subr.bf16.mxu0 0
        %1060 = vmatpush1.bf16.msra.mxu0 0
        %1061 = vmatprep.subr.bf16.mxu0 0
        %1062 = vmatpush1.bf16.msra.mxu0 0
        %1063 = vmatprep.subr.bf16.mxu0 0
        %1064 = vmatpush1.bf16.msra.mxu0 0
        %1065 = vmatprep.subr.bf16.mxu0 0
        %1066 = vmatpush1.bf16.msra.mxu0 0
        %1067 = vmatprep.mubr.bf16.mxu0 0
        %1068 = vmatmul.mubr.bf16.gmra.mrb[0].mxu0 %v1030
        %v1069 = vpop.f32.mrb[0].mxu0
        %v1070 = vadd.f32 0.0, %v1069
        %v1071 = vpop.f32.mrb[0].mxu0
        %v1072 = vpop.f32.mrb[0].mxu0
        %v1073 = vpop.f32.mrb[0].mxu0
        %1074 = vdwg.mxu0
        %v1075 = vpack.c.bf16 %v1070, %v1070
        %1076 = vrot.lane.b32.xlu0 %v851, 64
        %v1077 = vpop.permute.xlu0 %1076
        %1078 = vrot.lane.b32.xlu0 %v852, 64
        %v1079 = vpop.permute.xlu0 %1078
        %v1081 = vsel %vm854, %v1077, 0
        %v1084 = vsel %vm854, %v1079, 0
        %1086 = vmatprep.subr.bf16.mxu0 0
        %1087 = vmatpush1.bf16.xpose.msra.mxu0 %v1084
        %1088 = vmatprep.subr.bf16.mxu0 0
        %1089 = vmatpush1.bf16.xpose.msra.mxu0 0
        %1090 = vmatprep.subr.bf16.mxu0 0
        %1091 = vmatpush1.bf16.xpose.msra.mxu0 0
        %1092 = vmatprep.subr.bf16.mxu0 0
        %1093 = vmatpush1.bf16.xpose.msra.mxu0 0
        %1094 = vmatprep.subr.bf16.mxu0 0
        %1095 = vmatpush1.bf16.xpose.msra.mxu0 0
        %1096 = vmatprep.subr.bf16.mxu0 0
        %1097 = vmatpush1.bf16.xpose.msra.mxu0 0
        %1098 = vmatprep.subr.bf16.mxu0 0
        %1099 = vmatpush1.bf16.xpose.msra.mxu0 0
        %1100 = vmatprep.subr.bf16.mxu0 0
        %1101 = vmatpush1.bf16.xpose.msra.mxu0 0
        %1102 = vmatprep.subr.bf16.mxu0 0
        %1103 = vmatpush1.bf16.xpose.msra.mxu0 0
        %1104 = vmatprep.subr.bf16.mxu0 0
        %1105 = vmatpush1.bf16.xpose.msra.mxu0 0
        %1106 = vmatprep.subr.bf16.mxu0 0
        %1107 = vmatpush1.bf16.xpose.msra.mxu0 0
        %1108 = vmatprep.subr.bf16.mxu0 0
        %1109 = vmatpush1.bf16.xpose.msra.mxu0 0
        %1110 = vmatprep.subr.bf16.mxu0 0
        %1111 = vmatpush1.bf16.xpose.msra.mxu0 0
        %1112 = vmatprep.subr.bf16.mxu0 0
        %1113 = vmatpush1.bf16.xpose.msra.mxu0 0
        %1114 = vmatprep.subr.bf16.mxu0 0
        %1115 = vmatpush1.bf16.xpose.msra.mxu0 0
        %1116 = vmatprep.subr.bf16.mxu0 0
        %1117 = vmatpush1.bf16.xpose.msra.mxu0 0
        %1118 = vmatprep.mubr.bf16.mxu0 0
        %1119 = vmatmul.mubr.bf16.gmra.mrb[0].mxu0 %v1081
        %v1120 = vpop.f32.mrb[0].mxu0
        %v1121 = vadd.f32 %v849, %v1120
        %v1122 = vpop.f32.mrb[0].mxu0
        %v1123 = vpop.f32.mrb[0].mxu0
        %v1124 = vpop.f32.mrb[0].mxu0
        %1125 = vdwg.mxu0
        %v1126 = vsel %vm901, %v1121, -inf
        %1127 = vmax.xlane.f32.xlu0 %v1126
        %v1128 = vpop.xlane.xlu0 %1127
        %v1129 = vsub.f32 %v1121, %v1128
        %v1130 = vmul.f32 %v1129, 1.442695
        %v1131 = vpow.pop %v1130
        %v1132 = vsel %vm901, %v1131, 0.0
        %1133 = vadd.xlane.f32.xlu0 %v1132
        %v1134 = vpop.xlane.xlu0 %1133
        %v1135 = vrcp.pop %v1134
        %v1136 = vmul.f32 %v1131, %v1135
        %v1137 = vpack.c.bf16 %v1136, %v1136
        %1138 = vrot.lane.b32.xlu0 %v853, 64
        %v1139 = vpop.permute.xlu0 %1138
        %v1141 = vsel %vm901, %v1137, 0
        %v1144 = vsel %vm917, %v1139, 0
        %1146 = vmatprep.subr.bf16.mxu0 0
        %1147 = vmatpush1.bf16.msra.mxu0 %v1144
        %1148 = vmatprep.subr.bf16.mxu0 0
        %1149 = vmatpush1.bf16.msra.mxu0 0
        %1150 = vmatprep.subr.bf16.mxu0 0
        %1151 = vmatpush1.bf16.msra.mxu0 0
        %1152 = vmatprep.subr.bf16.mxu0 0
        %1153 = vmatpush1.bf16.msra.mxu0 0
        %1154 = vmatprep.subr.bf16.mxu0 0
        %1155 = vmatpush1.bf16.msra.mxu0 0
        %1156 = vmatprep.subr.bf16.mxu0 0
        %1157 = vmatpush1.bf16.msra.mxu0 0
        %1158 = vmatprep.subr.bf16.mxu0 0
        %1159 = vmatpush1.bf16.msra.mxu0 0
        %1160 = vmatprep.subr.bf16.mxu0 0
        %1161 = vmatpush1.bf16.msra.mxu0 0
        %1162 = vmatprep.subr.bf16.mxu0 0
        %1163 = vmatpush1.bf16.msra.mxu0 0
        %1164 = vmatprep.subr.bf16.mxu0 0
        %1165 = vmatpush1.bf16.msra.mxu0 0
        %1166 = vmatprep.subr.bf16.mxu0 0
        %1167 = vmatpush1.bf16.msra.mxu0 0
        %1168 = vmatprep.subr.bf16.mxu0 0
        %1169 = vmatpush1.bf16.msra.mxu0 0
        %1170 = vmatprep.subr.bf16.mxu0 0
        %1171 = vmatpush1.bf16.msra.mxu0 0
        %1172 = vmatprep.subr.bf16.mxu0 0
        %1173 = vmatpush1.bf16.msra.mxu0 0
        %1174 = vmatprep.subr.bf16.mxu0 0
        %1175 = vmatpush1.bf16.msra.mxu0 0
        %1176 = vmatprep.subr.bf16.mxu0 0
        %1177 = vmatpush1.bf16.msra.mxu0 0
        %1178 = vmatprep.mubr.bf16.mxu0 0
        %1179 = vmatmul.mubr.bf16.gmra.mrb[0].mxu0 %v1141
        %v1180 = vpop.f32.mrb[0].mxu0
        %v1181 = vadd.f32 0.0, %v1180
        %v1182 = vpop.f32.mrb[0].mxu0
        %v1183 = vpop.f32.mrb[0].mxu0
        %v1184 = vpop.f32.mrb[0].mxu0
        %1185 = vdwg.mxu0
        %v1186 = vpack.c.bf16 %v1181, %v1181
        %1187 = vrot.lane.b32.xlu0 %v851, 32
        %v1188 = vpop.permute.xlu0 %1187
        %1189 = vrot.lane.b32.xlu0 %v852, 32
        %v1190 = vpop.permute.xlu0 %1189
        %v1192 = vsel %vm854, %v1188, 0
        %v1195 = vsel %vm854, %v1190, 0
        %1197 = vmatprep.subr.bf16.mxu0 0
        %1198 = vmatpush1.bf16.xpose.msra.mxu0 %v1195
        %1199 = vmatprep.subr.bf16.mxu0 0
        %1200 = vmatpush1.bf16.xpose.msra.mxu0 0
        %1201 = vmatprep.subr.bf16.mxu0 0
        %1202 = vmatpush1.bf16.xpose.msra.mxu0 0
        %1203 = vmatprep.subr.bf16.mxu0 0
        %1204 = vmatpush1.bf16.xpose.msra.mxu0 0
        %1205 = vmatprep.subr.bf16.mxu0 0
        %1206 = vmatpush1.bf16.xpose.msra.mxu0 0
        %1207 = vmatprep.subr.bf16.mxu0 0
        %1208 = vmatpush1.bf16.xpose.msra.mxu0 0
        %1209 = vmatprep.subr.bf16.mxu0 0
        %1210 = vmatpush1.bf16.xpose.msra.mxu0 0
        %1211 = vmatprep.subr.bf16.mxu0 0
        %1212 = vmatpush1.bf16.xpose.msra.mxu0 0
        %1213 = vmatprep.subr.bf16.mxu0 0
        %1214 = vmatpush1.bf16.xpose.msra.mxu0 0
        %1215 = vmatprep.subr.bf16.mxu0 0
        %1216 = vmatpush1.bf16.xpose.msra.mxu0 0
        %1217 = vmatprep.subr.bf16.mxu0 0
        %1218 = vmatpush1.bf16.xpose.msra.mxu0 0
        %1219 = vmatprep.subr.bf16.mxu0 0
        %1220 = vmatpush1.bf16.xpose.msra.mxu0 0
        %1221 = vmatprep.subr.bf16.mxu0 0
        %1222 = vmatpush1.bf16.xpose.msra.mxu0 0
        %1223 = vmatprep.subr.bf16.mxu0 0
        %1224 = vmatpush1.bf16.xpose.msra.mxu0 0
        %1225 = vmatprep.subr.bf16.mxu0 0
        %1226 = vmatpush1.bf16.xpose.msra.mxu0 0
        %1227 = vmatprep.subr.bf16.mxu0 0
        %1228 = vmatpush1.bf16.xpose.msra.mxu0 0
        %1229 = vmatprep.mubr.bf16.mxu0 0
        %1230 = vmatmul.mubr.bf16.gmra.mrb[0].mxu0 %v1192
        %v1231 = vpop.f32.mrb[0].mxu0
        %v1232 = vadd.f32 %v849, %v1231
        %v1233 = vpop.f32.mrb[0].mxu0
        %v1234 = vpop.f32.mrb[0].mxu0
        %v1235 = vpop.f32.mrb[0].mxu0
        %1236 = vdwg.mxu0
        %v1237 = vsel %vm901, %v1232, -inf
        %1238 = vmax.xlane.f32.xlu0 %v1237
        %v1239 = vpop.xlane.xlu0 %1238
        %v1240 = vsub.f32 %v1232, %v1239
        %v1241 = vmul.f32 %v1240, 1.442695
        %v1242 = vpow.pop %v1241
        %v1243 = vsel %vm901, %v1242, 0.0
        %1244 = vadd.xlane.f32.xlu0 %v1243
        %v1245 = vpop.xlane.xlu0 %1244
        %v1246 = vrcp.pop %v1245
        %v1247 = vmul.f32 %v1242, %v1246
        %v1248 = vpack.c.bf16 %v1247, %v1247
        %1249 = vrot.lane.b32.xlu0 %v853, 32
        %v1250 = vpop.permute.xlu0 %1249
        %v1252 = vsel %vm901, %v1248, 0
        %v1255 = vsel %vm917, %v1250, 0
        %1257 = vmatprep.subr.bf16.mxu0 0
        %1258 = vmatpush1.bf16.msra.mxu0 %v1255
        %1259 = vmatprep.subr.bf16.mxu0 0
        %1260 = vmatpush1.bf16.msra.mxu0 0
        %1261 = vmatprep.subr.bf16.mxu0 0
        %1262 = vmatpush1.bf16.msra.mxu0 0
        %1263 = vmatprep.subr.bf16.mxu0 0
        %1264 = vmatpush1.bf16.msra.mxu0 0
        %1265 = vmatprep.subr.bf16.mxu0 0
        %1266 = vmatpush1.bf16.msra.mxu0 0
        %1267 = vmatprep.subr.bf16.mxu0 0
        %1268 = vmatpush1.bf16.msra.mxu0 0
        %1269 = vmatprep.subr.bf16.mxu0 0
        %1270 = vmatpush1.bf16.msra.mxu0 0
        %1271 = vmatprep.subr.bf16.mxu0 0
        %1272 = vmatpush1.bf16.msra.mxu0 0
        %1273 = vmatprep.subr.bf16.mxu0 0
        %1274 = vmatpush1.bf16.msra.mxu0 0
        %1275 = vmatprep.subr.bf16.mxu0 0
        %1276 = vmatpush1.bf16.msra.mxu0 0
        %1277 = vmatprep.subr.bf16.mxu0 0
        %1278 = vmatpush1.bf16.msra.mxu0 0
        %1279 = vmatprep.subr.bf16.mxu0 0
        %1280 = vmatpush1.bf16.msra.mxu0 0
        %1281 = vmatprep.subr.bf16.mxu0 0
        %1282 = vmatpush1.bf16.msra.mxu0 0
        %1283 = vmatprep.subr.bf16.mxu0 0
        %1284 = vmatpush1.bf16.msra.mxu0 0
        %1285 = vmatprep.subr.bf16.mxu0 0
        %1286 = vmatpush1.bf16.msra.mxu0 0
        %1287 = vmatprep.subr.bf16.mxu0 0
        %1288 = vmatpush1.bf16.msra.mxu0 0
        %1289 = vmatprep.mubr.bf16.mxu0 0
        %1290 = vmatmul.mubr.bf16.gmra.mrb[0].mxu0 %v1252
        %v1291 = vpop.f32.mrb[0].mxu0
        %v1292 = vadd.f32 0.0, %v1291
        %v1293 = vpop.f32.mrb[0].mxu0
        %v1294 = vpop.f32.mrb[0].mxu0
        %v1295 = vpop.f32.mrb[0].mxu0
        %1296 = vdwg.mxu0
        %v1297 = vpack.c.bf16 %v1292, %v1292
        %1299 = vrot.lane.b32.xlu0 %v1075, 32
        %v1300 = vpop.permute.xlu0 %1299
        %1302 = vrot.lane.b32.xlu0 %v1186, 64
        %v1303 = vpop.permute.xlu0 %1302
        %1305 = vrot.lane.b32.xlu0 %v1297, 96
        %v1306 = vpop.permute.xlu0 %1305
        %v1309 = vsel %vm854, %v961, %v1300
        %vm1310 = vcmask 523264
        %v1312 = vsel %vm1310, %v1309, %v1303
        %vm1313 = vcmask 785408
        %v1315 = vsel %vm1313, %v1312, %v1306
        %v1317 = vld [vmem:[%s473] sm:$0xf]
        %v1318 = vld [vmem:[%s473 + $0x4] sm:$0xf]
        %v1319 = vld [vmem:[%s473 + $0x8] sm:$0xf]
        %v1320 = vld [vmem:[%s473 + $0xc] sm:$0xf]
        %v1321 = vld [vmem:[%s473 + $0x10] sm:$0xf]
        %v1322 = vld [vmem:[%s473 + $0x14] sm:$0xf]
        %v1323 = vld [vmem:[%s473 + $0x18] sm:$0xf]
        %v1324 = vld [vmem:[%s473 + $0x1c] sm:$0xf]
        %v1325 = vld [vmem:[%s473 + $0x20] sm:$0xf]
        %v1326 = vld [vmem:[%s473 + $0x24] sm:$0xf]
        %v1327 = vld [vmem:[%s473 + $0x28] sm:$0xf]
        %v1328 = vld [vmem:[%s473 + $0x2c] sm:$0xf]
        %v1329 = vld [vmem:[%s473 + $0x30] sm:$0xf]
        %v1330 = vld [vmem:[%s473 + $0x34] sm:$0xf]
        %v1331 = vld [vmem:[%s473 + $0x38] sm:$0xf]
        %v1332 = vld [vmem:[%s473 + $0x3c] sm:$0xf]
        %v1333 = vlaneseq
        %v1334 = vshrl.u32 %v1333, 7
        %v1335 = vsub.s32 3, %v1334
        %v1336 = vrot.slane %v581, %v1335
        %v1353 = vunpack.c.l.b16 %v1317
        %v1354 = vunpack.c.l.b16 %v1318
        %v1355 = vunpack.c.l.b16 %v1319
        %v1356 = vunpack.c.l.b16 %v1320
        %v1357 = vunpack.c.l.b16 %v1321
        %v1358 = vunpack.c.l.b16 %v1322
        %v1359 = vunpack.c.l.b16 %v1323
        %v1360 = vunpack.c.l.b16 %v1324
        %v1361 = vunpack.c.l.b16 %v1325
        %v1362 = vunpack.c.l.b16 %v1326
        %v1363 = vunpack.c.l.b16 %v1327
        %v1364 = vunpack.c.l.b16 %v1328
        %v1365 = vunpack.c.l.b16 %v1329
        %v1366 = vunpack.c.l.b16 %v1330
        %v1367 = vunpack.c.l.b16 %v1331
        %v1368 = vunpack.c.l.b16 %v1332
        %v1369 = vpack.c.b16 %v1354, %v1353
        %v1370 = vpack.c.b16 %v1356, %v1355
        %v1371 = vpack.c.b16 %v1358, %v1357
        %v1372 = vpack.c.b16 %v1360, %v1359
        %v1373 = vpack.c.b16 %v1362, %v1361
        %v1374 = vpack.c.b16 %v1364, %v1363
        %v1375 = vpack.c.b16 %v1366, %v1365
        %v1376 = vpack.c.b16 %v1368, %v1367
        %1385 = vmatprep.subr.bf16.mxu0 0
        %1386 = vmatpush1.bf16.msra.mxu0 %v1369
        %1387 = vmatprep.subr.bf16.mxu0 0
        %1388 = vmatpush1.bf16.msra.mxu0 %v1370
        %1389 = vmatprep.subr.bf16.mxu0 0
        %1390 = vmatpush1.bf16.msra.mxu0 %v1371
        %1391 = vmatprep.subr.bf16.mxu0 0
        %1392 = vmatpush1.bf16.msra.mxu0 %v1372
        %1393 = vmatprep.subr.bf16.mxu0 0
        %1394 = vmatpush1.bf16.msra.mxu0 %v1373
        %1395 = vmatprep.subr.bf16.mxu0 0
        %1396 = vmatpush1.bf16.msra.mxu0 %v1374
        %1397 = vmatprep.subr.bf16.mxu0 0
        %1398 = vmatpush1.bf16.msra.mxu0 %v1375
        %1399 = vmatprep.subr.bf16.mxu0 0
        %1400 = vmatpush1.bf16.msra.mxu0 %v1376
        %1401 = vmatprep.subr.bf16.mxu0 0
        %1402 = vmatpush1.bf16.msra.mxu0 0
        %1403 = vmatprep.subr.bf16.mxu0 0
        %1404 = vmatpush1.bf16.msra.mxu0 0
        %1405 = vmatprep.subr.bf16.mxu0 0
        %1406 = vmatpush1.bf16.msra.mxu0 0
        %1407 = vmatprep.subr.bf16.mxu0 0
        %1408 = vmatpush1.bf16.msra.mxu0 0
        %1409 = vmatprep.subr.bf16.mxu0 0
        %1410 = vmatpush1.bf16.msra.mxu0 0
        %1411 = vmatprep.subr.bf16.mxu0 0
        %1412 = vmatpush1.bf16.msra.mxu0 0
        %1413 = vmatprep.subr.bf16.mxu0 0
        %1414 = vmatpush1.bf16.msra.mxu0 0
        %1415 = vmatprep.subr.bf16.mxu0 0
        %1416 = vmatpush1.bf16.msra.mxu0 0
        %1417 = vmatprep.mubr.bf16.mxu0 0
        %1418 = vmatmul.mubr.bf16.gmra.mrb[0].mxu0 %v1315
        %v1419 = vpop.f32.mrb[0].mxu0
        %v1420 = vadd.f32 %v1336, %v1419
        %v1421 = vpop.f32.mrb[0].mxu0
        %v1422 = vpop.f32.mrb[0].mxu0
        %v1423 = vpop.f32.mrb[0].mxu0
        %1424 = vdwg.mxu0
        %v1425 = vadd.f32 %v586, %v1420
        %1426 = vadd.xlane.f32.xlu0 %v1425
        %v1427 = vpop.xlane.xlu0 %1426
        %v1428 = vrcp.pop 128.0
        %v1429 = vmul.f32 %v1427, %v1428
        %v1430 = vsub.f32 %v1425, %v1429
        %v1431 = vmul.f32 %v1430, %v1430
        %1432 = vadd.xlane.f32.xlu0 %v1431
        %v1433 = vpop.xlane.xlu0 %1432
        %v1434 = vmul.f32 %v1433, %v1428
        %v1435 = vadd.f32 %v1434, 1e-05
        %v1436 = vrsqrt.pop %v1435
        %v1437 = vmul.f32 %v1430, %v1436
        %v1438 = vlaneseq
        %v1439 = vshrl.u32 %v1438, 7
        %v1440 = vsub.s32 7, %v1439
        %v1441 = vrot.slane %v581, %v1440
        %v1442 = vmul.f32 %v1437, %v1441
        %v1443 = vlaneseq
        %v1444 = vshrl.u32 %v1443, 7
        %v1445 = vsub.s32 0, %v1444
        %v1446 = vrot.slane %v582, %v1445
        %v1447 = vadd.f32 %v1442, %v1446
        %v1448 = vpack.c.bf16 %v1447, %v1447
        %v1449 = vld [vmem:[%s482] sm:$0xff]
        %v1450 = vld [vmem:[%s482 + $0x8] sm:$0xff]
        %v1451 = vld [vmem:[%s482 + $0x10] sm:$0xff]
        %v1452 = vld [vmem:[%s482 + $0x18] sm:$0xff]
        %v1453 = vld [vmem:[%s482 + $0x20] sm:$0xff]
        %v1454 = vld [vmem:[%s482 + $0x28] sm:$0xff]
        %v1455 = vld [vmem:[%s482 + $0x30] sm:$0xff]
        %v1456 = vld [vmem:[%s482 + $0x38] sm:$0xff]
        %v1457 = vld [vmem:[%s482 + $0x40] sm:$0xff]
        %v1458 = vld [vmem:[%s482 + $0x48] sm:$0xff]
        %v1459 = vld [vmem:[%s482 + $0x50] sm:$0xff]
        %v1460 = vld [vmem:[%s482 + $0x58] sm:$0xff]
        %v1461 = vld [vmem:[%s482 + $0x60] sm:$0xff]
        %v1462 = vld [vmem:[%s482 + $0x68] sm:$0xff]
        %v1463 = vld [vmem:[%s482 + $0x70] sm:$0xff]
        %v1464 = vld [vmem:[%s482 + $0x78] sm:$0xff]
        %v1465 = vlaneseq
        %v1466 = vshrl.u32 %v1465, 7
        %v1467 = vsub.s32 4, %v1466
        %v1468 = vrot.slane %v581, %v1467
        %v1469 = vlaneseq
        %v1470 = vshrl.u32 %v1469, 7
        %v1471 = vsub.s32 4, %v1470
        %v1472 = vrot.slane %v584, %v1471
        %v1489 = vunpack.c.l.b16 %v1449
        %v1490 = vunpack.c.h.b16 %v1449
        %v1491 = vunpack.c.l.b16 %v1450
        %v1492 = vunpack.c.h.b16 %v1450
        %v1493 = vunpack.c.l.b16 %v1451
        %v1494 = vunpack.c.h.b16 %v1451
        %v1495 = vunpack.c.l.b16 %v1452
        %v1496 = vunpack.c.h.b16 %v1452
        %v1497 = vunpack.c.l.b16 %v1453
        %v1498 = vunpack.c.h.b16 %v1453
        %v1499 = vunpack.c.l.b16 %v1454
        %v1500 = vunpack.c.h.b16 %v1454
        %v1501 = vunpack.c.l.b16 %v1455
        %v1502 = vunpack.c.h.b16 %v1455
        %v1503 = vunpack.c.l.b16 %v1456
        %v1504 = vunpack.c.h.b16 %v1456
        %v1505 = vunpack.c.l.b16 %v1457
        %v1506 = vunpack.c.h.b16 %v1457
        %v1507 = vunpack.c.l.b16 %v1458
        %v1508 = vunpack.c.h.b16 %v1458
        %v1509 = vunpack.c.l.b16 %v1459
        %v1510 = vunpack.c.h.b16 %v1459
        %v1511 = vunpack.c.l.b16 %v1460
        %v1512 = vunpack.c.h.b16 %v1460
        %v1513 = vunpack.c.l.b16 %v1461
        %v1514 = vunpack.c.h.b16 %v1461
        %v1515 = vunpack.c.l.b16 %v1462
        %v1516 = vunpack.c.h.b16 %v1462
        %v1517 = vunpack.c.l.b16 %v1463
        %v1518 = vunpack.c.h.b16 %v1463
        %v1519 = vunpack.c.l.b16 %v1464
        %v1520 = vunpack.c.h.b16 %v1464
        %v1521 = vpack.c.b16 %v1491, %v1489
        %v1522 = vpack.c.b16 %v1492, %v1490
        %v1523 = vpack.c.b16 %v1495, %v1493
        %v1524 = vpack.c.b16 %v1496, %v1494
        %v1525 = vpack.c.b16 %v1499, %v1497
        %v1526 = vpack.c.b16 %v1500, %v1498
        %v1527 = vpack.c.b16 %v1503, %v1501
        %v1528 = vpack.c.b16 %v1504, %v1502
        %v1529 = vpack.c.b16 %v1507, %v1505
        %v1530 = vpack.c.b16 %v1508, %v1506
        %v1531 = vpack.c.b16 %v1511, %v1509
        %v1532 = vpack.c.b16 %v1512, %v1510
        %v1533 = vpack.c.b16 %v1515, %v1513
        %v1534 = vpack.c.b16 %v1516, %v1514
        %v1535 = vpack.c.b16 %v1519, %v1517
        %v1536 = vpack.c.b16 %v1520, %v1518
        %1553 = vmatprep.subr.bf16.mxu0 %v1522
        %1554 = vmatpush1.bf16.msra.mxu0 %v1521
        %1555 = vmatprep.subr.bf16.mxu0 %v1524
        %1556 = vmatpush1.bf16.msra.mxu0 %v1523
        %1557 = vmatprep.subr.bf16.mxu0 %v1526
        %1558 = vmatpush1.bf16.msra.mxu0 %v1525
        %1559 = vmatprep.subr.bf16.mxu0 %v1528
        %1560 = vmatpush1.bf16.msra.mxu0 %v1527
        %1561 = vmatprep.subr.bf16.mxu0 %v1530
        %1562 = vmatpush1.bf16.msra.mxu0 %v1529
        %1563 = vmatprep.subr.bf16.mxu0 %v1532
        %1564 = vmatpush1.bf16.msra.mxu0 %v1531
        %1565 = vmatprep.subr.bf16.mxu0 %v1534
        %1566 = vmatpush1.bf16.msra.mxu0 %v1533
        %1567 = vmatprep.subr.bf16.mxu0 %v1536
        %1568 = vmatpush1.bf16.msra.mxu0 %v1535
        %1569 = vmatprep.subr.bf16.mxu0 0
        %1570 = vmatpush1.bf16.msra.mxu0 0
        %1571 = vmatprep.subr.bf16.mxu0 0
        %1572 = vmatpush1.bf16.msra.mxu0 0
        %1573 = vmatprep.subr.bf16.mxu0 0
        %1574 = vmatpush1.bf16.msra.mxu0 0
        %1575 = vmatprep.subr.bf16.mxu0 0
        %1576 = vmatpush1.bf16.msra.mxu0 0
        %1577 = vmatprep.subr.bf16.mxu0 0
        %1578 = vmatpush1.bf16.msra.mxu0 0
        %1579 = vmatprep.subr.bf16.mxu0 0
        %1580 = vmatpush1.bf16.msra.mxu0 0
        %1581 = vmatprep.subr.bf16.mxu0 0
        %1582 = vmatpush1.bf16.msra.mxu0 0
        %1583 = vmatprep.subr.bf16.mxu0 0
        %1584 = vmatpush1.bf16.msra.mxu0 0
        %1585 = vmatprep.mubr.bf16.mxu0 0
        %1586 = vmatmul.mubr.bf16.gmra.mrb[0].mxu0 %v1448
        %v1587 = vpop.f32.mrb[0].mxu0
        %v1588 = vadd.f32 %v1468, %v1587
        %v1589 = vpop.f32.mrb[0].mxu0
        %v1590 = vadd.f32 %v1472, %v1589
        %v1591 = vpop.f32.mrb[0].mxu0
        %v1592 = vpop.f32.mrb[0].mxu0
        %1593 = vdwg.mxu0
        %v1594 = vmax.f32 %v1588, 0.0
        %v1595 = vmax.f32 %v1590, 0.0
        %v1596 = vpack.c.bf16 %v1594, %v1594
        %v1597 = vpack.c.bf16 %v1595, %v1595
        %v1598 = vld [vmem:[%s491] sm:$0xf]
        %v1599 = vld [vmem:[%s491 + $0x4] sm:$0xf]
        %v1600 = vld [vmem:[%s491 + $0x8] sm:$0xf]
        %v1601 = vld [vmem:[%s491 + $0xc] sm:$0xf]
        %v1602 = vld [vmem:[%s491 + $0x10] sm:$0xf]
        %v1603 = vld [vmem:[%s491 + $0x14] sm:$0xf]
        %v1604 = vld [vmem:[%s491 + $0x18] sm:$0xf]
        %v1605 = vld [vmem:[%s491 + $0x1c] sm:$0xf]
        %v1606 = vld [vmem:[%s491 + $0x20] sm:$0xf]
        %v1607 = vld [vmem:[%s491 + $0x24] sm:$0xf]
        %v1608 = vld [vmem:[%s491 + $0x28] sm:$0xf]
        %v1609 = vld [vmem:[%s491 + $0x2c] sm:$0xf]
        %v1610 = vld [vmem:[%s491 + $0x30] sm:$0xf]
        %v1611 = vld [vmem:[%s491 + $0x34] sm:$0xf]
        %v1612 = vld [vmem:[%s491 + $0x38] sm:$0xf]
        %v1613 = vld [vmem:[%s491 + $0x3c] sm:$0xf]
        %v1614 = vld [vmem:[%s491 + $0x40] sm:$0xf]
        %v1615 = vld [vmem:[%s491 + $0x44] sm:$0xf]
        %v1616 = vld [vmem:[%s491 + $0x48] sm:$0xf]
        %v1617 = vld [vmem:[%s491 + $0x4c] sm:$0xf]
        %v1618 = vld [vmem:[%s491 + $0x50] sm:$0xf]
        %v1619 = vld [vmem:[%s491 + $0x54] sm:$0xf]
        %v1620 = vld [vmem:[%s491 + $0x58] sm:$0xf]
        %v1621 = vld [vmem:[%s491 + $0x5c] sm:$0xf]
        %v1622 = vld [vmem:[%s491 + $0x60] sm:$0xf]
        %v1623 = vld [vmem:[%s491 + $0x64] sm:$0xf]
        %v1624 = vld [vmem:[%s491 + $0x68] sm:$0xf]
        %v1625 = vld [vmem:[%s491 + $0x6c] sm:$0xf]
        %v1626 = vld [vmem:[%s491 + $0x70] sm:$0xf]
        %v1627 = vld [vmem:[%s491 + $0x74] sm:$0xf]
        %v1628 = vld [vmem:[%s491 + $0x78] sm:$0xf]
        %v1629 = vld [vmem:[%s491 + $0x7c] sm:$0xf]
        %v1630 = vlaneseq
        %v1631 = vshrl.u32 %v1630, 7
        %v1632 = vsub.s32 6, %v1631
        %v1633 = vrot.slane %v581, %v1632
        %v1666 = vunpack.c.l.b16 %v1598
        %v1667 = vunpack.c.l.b16 %v1599
        %v1668 = vunpack.c.l.b16 %v1600
        %v1669 = vunpack.c.l.b16 %v1601
        %v1670 = vunpack.c.l.b16 %v1602
        %v1671 = vunpack.c.l.b16 %v1603
        %v1672 = vunpack.c.l.b16 %v1604
        %v1673 = vunpack.c.l.b16 %v1605
        %v1674 = vunpack.c.l.b16 %v1606
        %v1675 = vunpack.c.l.b16 %v1607
        %v1676 = vunpack.c.l.b16 %v1608
        %v1677 = vunpack.c.l.b16 %v1609
        %v1678 = vunpack.c.l.b16 %v1610
        %v1679 = vunpack.c.l.b16 %v1611
        %v1680 = vunpack.c.l.b16 %v1612
        %v1681 = vunpack.c.l.b16 %v1613
        %v1682 = vunpack.c.l.b16 %v1614
        %v1683 = vunpack.c.l.b16 %v1615
        %v1684 = vunpack.c.l.b16 %v1616
        %v1685 = vunpack.c.l.b16 %v1617
        %v1686 = vunpack.c.l.b16 %v1618
        %v1687 = vunpack.c.l.b16 %v1619
        %v1688 = vunpack.c.l.b16 %v1620
        %v1689 = vunpack.c.l.b16 %v1621
        %v1690 = vunpack.c.l.b16 %v1622
        %v1691 = vunpack.c.l.b16 %v1623
        %v1692 = vunpack.c.l.b16 %v1624
        %v1693 = vunpack.c.l.b16 %v1625
        %v1694 = vunpack.c.l.b16 %v1626
        %v1695 = vunpack.c.l.b16 %v1627
        %v1696 = vunpack.c.l.b16 %v1628
        %v1697 = vunpack.c.l.b16 %v1629
        %v1698 = vpack.c.b16 %v1667, %v1666
        %v1699 = vpack.c.b16 %v1669, %v1668
        %v1700 = vpack.c.b16 %v1671, %v1670
        %v1701 = vpack.c.b16 %v1673, %v1672
        %v1702 = vpack.c.b16 %v1675, %v1674
        %v1703 = vpack.c.b16 %v1677, %v1676
        %v1704 = vpack.c.b16 %v1679, %v1678
        %v1705 = vpack.c.b16 %v1681, %v1680
        %v1706 = vpack.c.b16 %v1683, %v1682
        %v1707 = vpack.c.b16 %v1685, %v1684
        %v1708 = vpack.c.b16 %v1687, %v1686
        %v1709 = vpack.c.b16 %v1689, %v1688
        %v1710 = vpack.c.b16 %v1691, %v1690
        %v1711 = vpack.c.b16 %v1693, %v1692
        %v1712 = vpack.c.b16 %v1695, %v1694
        %v1713 = vpack.c.b16 %v1697, %v1696
        %1730 = vmatprep.subr.bf16.mxu0 0
        %1731 = vmatpush1.bf16.msra.mxu0 %v1698
        %1732 = vmatprep.subr.bf16.mxu0 0
        %1733 = vmatpush1.bf16.msra.mxu0 %v1699
        %1734 = vmatprep.subr.bf16.mxu0 0
        %1735 = vmatpush1.bf16.msra.mxu0 %v1700
        %1736 = vmatprep.subr.bf16.mxu0 0
        %1737 = vmatpush1.bf16.msra.mxu0 %v1701
        %1738 = vmatprep.subr.bf16.mxu0 0
        %1739 = vmatpush1.bf16.msra.mxu0 %v1702
        %1740 = vmatprep.subr.bf16.mxu0 0
        %1741 = vmatpush1.bf16.msra.mxu0 %v1703
        %1742 = vmatprep.subr.bf16.mxu0 0
        %1743 = vmatpush1.bf16.msra.mxu0 %v1704
        %1744 = vmatprep.subr.bf16.mxu0 0
        %1745 = vmatpush1.bf16.msra.mxu0 %v1705
        %1746 = vmatprep.subr.bf16.mxu0 0
        %1747 = vmatpush1.bf16.msra.mxu0 %v1706
        %1748 = vmatprep.subr.bf16.mxu0 0
        %1749 = vmatpush1.bf16.msra.mxu0 %v1707
        %1750 = vmatprep.subr.bf16.mxu0 0
        %1751 = vmatpush1.bf16.msra.mxu0 %v1708
        %1752 = vmatprep.subr.bf16.mxu0 0
        %1753 = vmatpush1.bf16.msra.mxu0 %v1709
        %1754 = vmatprep.subr.bf16.mxu0 0
        %1755 = vmatpush1.bf16.msra.mxu0 %v1710
        %1756 = vmatprep.subr.bf16.mxu0 0
        %1757 = vmatpush1.bf16.msra.mxu0 %v1711
        %1758 = vmatprep.subr.bf16.mxu0 0
        %1759 = vmatpush1.bf16.msra.mxu0 %v1712
        %1760 = vmatprep.subr.bf16.mxu0 0
        %1761 = vmatpush1.bf16.msra.mxu0 %v1713
        %1762 = vmatprep.mubr.bf16.mxu0 %v1597
        %1763 = vmatmul.mubr.bf16.gmra.mrb[0].mxu0 %v1596
        %v1764 = vpop.f32.mrb[0].mxu0
        %v1765 = vadd.f32 %v1633, %v1764
        %v1766 = vpop.f32.mrb[0].mxu0
        %v1767 = vpop.f32.mrb[0].mxu0
        %v1768 = vpop.f32.mrb[0].mxu0
        %1769 = vdwg.mxu0
        %v1770 = vadd.f32 %v1447, %v1765
        %1771 = vadd.xlane.f32.xlu0 %v1770
        %v1772 = vpop.xlane.xlu0 %1771
        %v1773 = vmul.f32 %v1772, %v1428
        %v1774 = vsub.f32 %v1770, %v1773
        %v1775 = vmul.f32 %v1774, %v1774
        %1776 = vadd.xlane.f32.xlu0 %v1775
        %v1777 = vpop.xlane.xlu0 %1776
        %v1778 = vmul.f32 %v1777, %v1428
        %v1779 = vadd.f32 %v1778, 1e-05
        %v1780 = vrsqrt.pop %v1779
        %v1781 = vmul.f32 %v1774, %v1780
        %v1782 = vlaneseq
        %v1783 = vshrl.u32 %v1782, 7
        %v1784 = vsub.s32 1, %v1783
        %v1785 = vrot.slane %v582, %v1784
        %v1786 = vmul.f32 %v1781, %v1785
        %v1787 = vlaneseq
        %v1788 = vshrl.u32 %v1787, 7
        %v1789 = vsub.s32 2, %v1788
        %v1790 = vrot.slane %v582, %v1789
        %v1791 = vadd.f32 %v1786, %v1790
        %1792 = vst [vmem:[#allocation2] sm:$0xff] %v1791
        %p1793 = scmp.eq.s32.totalorder %s38, 1
        // Predicated region
        $region81: #{tpu_custom_call.1} parent=59 // pred_check
          %p1794 = pneg %p1793
        $region82: #{tpu_custom_call.1} parent=59 // pred_check_branch
          %1796 = sbr.rel (%p1794) target = $region84
        $region83: #{tpu_custom_call.1} parent=59 // pred_region
          %v1797 = vld [vmem:[%s568] sm:$0xff]
          %1799 = vset.pattern.permute.xlu0 0
          %1800 = vperm.xlu0 %1799, %v1797
          %v1801 = vpop.permute.xlu0 %1800
          %v1803 = vmul.f32 %v1791, %v1801
          %v1804 = vrot.slane %v1803, 4
          %v1805 = vadd.f32 %v1803, %v1804
          %v1806 = vrot.slane %v1805, 2
          %v1807 = vadd.f32 %v1805, %v1806
          %v1808 = vrot.slane %v1807, 1
          %v1809 = vadd.f32 %v1807, %v1808
          %v1810 = vmax.f32 %v1809, 0.0
          %v1811 = vpack.c.bf16 %v1810, %v1810
          %v1812 = vld [vmem:[%s8] sm:$0xf]
          %v1813 = vld [vmem:[%s8 + $0x4] sm:$0xf]
          %v1814 = vld [vmem:[%s8 + $0x8] sm:$0xf]
          %v1815 = vld [vmem:[%s8 + $0xc] sm:$0xf]
          %v1816 = vld [vmem:[%s8 + $0x10] sm:$0xf]
          %v1817 = vld [vmem:[%s8 + $0x14] sm:$0xf]
          %v1818 = vld [vmem:[%s8 + $0x18] sm:$0xf]
          %v1819 = vld [vmem:[%s8 + $0x1c] sm:$0xf]
          %v1820 = vld [vmem:[%s8 + $0x20] sm:$0xf]
          %v1821 = vld [vmem:[%s8 + $0x24] sm:$0xf]
          %v1822 = vld [vmem:[%s8 + $0x28] sm:$0xf]
          %v1823 = vld [vmem:[%s8 + $0x2c] sm:$0xf]
          %v1824 = vld [vmem:[%s8 + $0x30] sm:$0xf]
          %v1825 = vld [vmem:[%s8 + $0x34] sm:$0xf]
          %v1826 = vld [vmem:[%s8 + $0x38] sm:$0xf]
          %v1827 = vld [vmem:[%s8 + $0x3c] sm:$0xf]
          %v1828 = vld [vmem:[%s9] sm:$0x1]
          %v1845 = vunpack.c.l.b16 %v1812
          %v1846 = vunpack.c.l.b16 %v1813
          %v1847 = vunpack.c.l.b16 %v1814
          %v1848 = vunpack.c.l.b16 %v1815
          %v1849 = vunpack.c.l.b16 %v1816
          %v1850 = vunpack.c.l.b16 %v1817
          %v1851 = vunpack.c.l.b16 %v1818
          %v1852 = vunpack.c.l.b16 %v1819
          %v1853 = vunpack.c.l.b16 %v1820
          %v1854 = vunpack.c.l.b16 %v1821
          %v1855 = vunpack.c.l.b16 %v1822
          %v1856 = vunpack.c.l.b16 %v1823
          %v1857 = vunpack.c.l.b16 %v1824
          %v1858 = vunpack.c.l.b16 %v1825
          %v1859 = vunpack.c.l.b16 %v1826
          %v1860 = vunpack.c.l.b16 %v1827
          %v1861 = vpack.c.b16 %v1846, %v1845
          %v1862 = vpack.c.b16 %v1848, %v1847
          %v1863 = vpack.c.b16 %v1850, %v1849
          %v1864 = vpack.c.b16 %v1852, %v1851
          %v1865 = vpack.c.b16 %v1854, %v1853
          %v1866 = vpack.c.b16 %v1856, %v1855
          %v1867 = vpack.c.b16 %v1858, %v1857
          %v1868 = vpack.c.b16 %v1860, %v1859
          %1877 = vmatprep.subr.bf16.mxu0 0
          %1878 = vmatpush1.bf16.msra.mxu0 %v1861
          %1879 = vmatprep.subr.bf16.mxu0 0
          %1880 = vmatpush1.bf16.msra.mxu0 %v1862
          %1881 = vmatprep.subr.bf16.mxu0 0
          %1882 = vmatpush1.bf16.msra.mxu0 %v1863
          %1883 = vmatprep.subr.bf16.mxu0 0
          %1884 = vmatpush1.bf16.msra.mxu0 %v1864
          %1885 = vmatprep.subr.bf16.mxu0 0
          %1886 = vmatpush1.bf16.msra.mxu0 %v1865
          %1887 = vmatprep.subr.bf16.mxu0 0
          %1888 = vmatpush1.bf16.msra.mxu0 %v1866
          %1889 = vmatprep.subr.bf16.mxu0 0
          %1890 = vmatpush1.bf16.msra.mxu0 %v1867
          %1891 = vmatprep.subr.bf16.mxu0 0
          %1892 = vmatpush1.bf16.msra.mxu0 %v1868
          %1893 = vmatprep.subr.bf16.mxu0 0
          %1894 = vmatpush1.bf16.msra.mxu0 0
          %1895 = vmatprep.subr.bf16.mxu0 0
          %1896 = vmatpush1.bf16.msra.mxu0 0
          %1897 = vmatprep.subr.bf16.mxu0 0
          %1898 = vmatpush1.bf16.msra.mxu0 0
          %1899 = vmatprep.subr.bf16.mxu0 0
          %1900 = vmatpush1.bf16.msra.mxu0 0
          %1901 = vmatprep.subr.bf16.mxu0 0
          %1902 = vmatpush1.bf16.msra.mxu0 0
          %1903 = vmatprep.subr.bf16.mxu0 0
          %1904 = vmatpush1.bf16.msra.mxu0 0
          %1905 = vmatprep.subr.bf16.mxu0 0
          %1906 = vmatpush1.bf16.msra.mxu0 0
          %1907 = vmatprep.subr.bf16.mxu0 0
          %1908 = vmatpush1.bf16.msra.mxu0 0
          %1909 = vmatprep.mubr.bf16.mxu0 0
          %1910 = vmatmul.mubr.bf16.gmra.mrb[0].mxu0 %v1811
          %v1911 = vpop.f32.mrb[0].mxu0
          %v1912 = vadd.f32 %v1828, %v1911
          %v1913 = vpop.f32.mrb[0].mxu0
          %v1914 = vpop.f32.mrb[0].mxu0
          %v1915 = vpop.f32.mrb[0].mxu0
          %1916 = vdwg.mxu0
          %1917 = vst [vmem:[%s557] sm:$0x1] %v1912
        $region84: #{tpu_custom_call.1} parent=59 // pred_fallthru
          _
        %s1918 = sand.u32 %s303, 1
        %s1919 = scalar_lea.sflag [#allocation5], %s1918
        %s1920 = sand.u32 %s303, 1
        %s1921 = scalar_lea.vmem [#allocation11], %s1920
        // Predicated region
        $region85: #{tpu_custom_call.1} parent=59 // pred_check
          %p1922 = pneg %p313
        $region86: #{tpu_custom_call.1} parent=59 // pred_check_branch
          %1924 = sbr.rel (%p1922) target = $region88
        $region87: #{tpu_custom_call.1} parent=59 // pred_region
          %s1926 = ssub.s32 16, 16
          %1927 = vsyncadd %s1919, %s1926
          %s1928 = smul.addr %s37, 16
          %s1929 = scalar_lea.hbm %s10, %s1928
          %s1931 = sshll.u32 %s1921, 4
          %s1932 = int_to_ptr.vmem [resolvable:$true] %s1931
          %1934 = dma.vmem_to_hbm [thread:$0]  %s1932, 16, %s1929, %s1919
        $region88: #{tpu_custom_call.1} parent=59 // pred_fallthru
          _
      $region60: #{tpu_custom_call.1} parent=5 // pred_fallthru
        _
      %p1935 = scmp.le.s32.totalorder 2, %s28
      // Predicated region
      $region89: #{tpu_custom_call.1} parent=5 // pred_check
        %p1936 = pneg %p1935
      $region90: #{tpu_custom_call.1} parent=5 // pred_check_branch
        %1938 = sbr.rel (%p1936) target = $region92
      $region91: #{tpu_custom_call.1} parent=5 // pred_region
        %s1939 = ssub.s32 %s28, 2
        // Predicated region
        $region93: #{tpu_custom_call.1} parent=91 // pred_check
          %p1940 = pneg %p319
        $region94: #{tpu_custom_call.1} parent=91 // pred_check_branch
          %1942 = sbr.rel (%p1940) target = $region96
        $region95: #{tpu_custom_call.1} parent=91 // pred_region
          %s1943 = sand.u32 %s304, 1
          %s1944 = scalar_lea.sflag [#allocation5], %s1943
          %s1945 = sand.u32 %s304, 1
          %s1946 = scalar_lea.vmem [#allocation11], %s1945
          %1947 = dma.done %s1944, 16
        $region96: #{tpu_custom_call.1} parent=91 // pred_fallthru
          _
      $region92: #{tpu_custom_call.1} parent=5 // pred_fallthru
        _
    $region6: #{tpu_custom_call.1} parent=1 // loop_footer
      %s32 = sadd.s32 1, %s28
    $region7: #{tpu_custom_call.1} parent=1 // loop_footer_branch
      %27 = sbr.rel target = $region3
    $region8: #{tpu_custom_call.1} parent=1 // loop_exit
      _
    %1948 = vsyncpa [#allocation4], 1
    %s1949 = scalar_lea.sflag [#allocation4], 1
    %1950 = vsyncpa %s1949, 1
    %1951 = vsyncpa [#allocation7], 1
    %s1952 = scalar_lea.sflag [#allocation7], 1
    %1953 = vsyncpa %s1952, 1
    %1954 = vsyncpa [#allocation10], 1
    %s1955 = scalar_lea.sflag [#allocation10], 1
    %1956 = vsyncpa %s1955, 1
    %1957 = vsyncpa [#allocation5], 1
    %s1958 = scalar_lea.sflag [#allocation5], 1
    %1959 = vsyncpa %s1958, 1

</llo_original>
